<compile_context>
chip_gen: v6e
topology: v6e:2x2x1
jax: 0.10.0
libtpu: 0.0.40
codegen_flags: <defaults>
</compile_context>

<pallas_src>
import jax
import jax.numpy as jnp
from jax.experimental import pallas as pl
from jax.experimental.pallas import tpu as pltpu

SEED_DIM = 256      # VotingModule seed feature dim (VotingModule(vote_factor, 256))
NUM_SEED = 128      # number of seed points produced by the backbone (fp2 level)
NUM_POINTS = 512    # raw point-cloud size
VOTE_FACTOR = 1
XYZ_PAD = 128       # xyz / offset head padded to one full lane tile
ROW_TILE = 128      # seed rows per grid step (2 steps for B=2 -> both TCs on v7x)


# ----------------------------- Pallas kernel ------------------------------- #
def _vgen_kernel(xyzp_ref, bw_ref, bb_ref,
                 w1_ref, b1_ref, w2_ref, b2_ref, w3_ref, b3_ref,
                 seed_ref, vxyzp_ref, vfeat_ref):
    xyzp = xyzp_ref[...]                                   # (T, 128) f32, lanes >= 3 are zero

    # Backbone lift stand-in (fused): ReLU(xyz @ Wb + bb)
    x = jnp.dot(xyzp.astype(jnp.bfloat16), bw_ref[...],
                preferred_element_type=jnp.float32) + bb_ref[...]
    x = jnp.maximum(x, 0.0)                                # (T, C) seed features, f32
    seed_ref[...] = x

    # conv1 (BN1 folded) + ReLU
    h = jnp.dot(x.astype(jnp.bfloat16), w1_ref[...],
                preferred_element_type=jnp.float32) + b1_ref[...]
    h = jnp.maximum(h, 0.0)
    # conv2 (BN2 folded) + ReLU
    h = jnp.dot(h.astype(jnp.bfloat16), w2_ref[...],
                preferred_element_type=jnp.float32) + b2_ref[...]
    h = jnp.maximum(h, 0.0)
    # conv3: xyz-offset head (zero-padded to 128 lanes) and feature-residual head
    # fused into a single (C, 128 + C) weight -> one MXU call, lane-aligned slices.
    o3 = jnp.dot(h.astype(jnp.bfloat16), w3_ref[...],
                 preferred_element_type=jnp.float32) + b3_ref[...]   # (T, 128 + C)

    off = o3[:, :XYZ_PAD]                                  # xyz offset (padded lanes = 0)
    res = o3[:, XYZ_PAD:]                                  # (T, C) feature residual

    vxyzp_ref[...] = xyzp + off                            # lane-dense store; padded lanes stay 0

    vf = x + res                                           # (T, C)
    # L2-normalize each vote's feature vector over channels (torch.norm p=2 dim=1 + div),
    # eps-guarded so a (near-)zero feature does not produce inf/NaN.
    sq = jnp.sum(vf * vf, axis=-1, keepdims=True)
    vfeat_ref[...] = vf * jax.lax.rsqrt(sq + 1e-12)


def votepose_core(xyz, params):
    """Fused backbone-lift + VotingModule + L2 norm as one Pallas kernel."""
    B, N, _ = xyz.shape
    C = SEED_DIM
    BN = B * N
    assert BN % ROW_TILE == 0
    n_tiles = BN // ROW_TILE

    # Flatten batch into rows; pad xyz to a full 128-lane tile (lane-dense loads/stores).
    xyzp = jnp.pad(xyz.reshape(BN, 3).astype(jnp.float32), ((0, 0), (0, XYZ_PAD - 3)))

    bw, bb, w1, b1, w2, b2, w3, b3 = params["vgen"]

    def wspec(shape):
        return pl.BlockSpec(shape, lambda i: (0, 0))       # constant -> loaded once

    in_specs = [
        pl.BlockSpec((ROW_TILE, XYZ_PAD), lambda i: (i, 0)),   # padded seed xyz
        wspec((XYZ_PAD, C)), wspec((1, C)),                    # backbone lift (bf16 / f32)
        wspec((C, C)), wspec((1, C)),                          # conv1 + BN1 folded
        wspec((C, C)), wspec((1, C)),                          # conv2 + BN2 folded
        wspec((C, XYZ_PAD + C)), wspec((1, XYZ_PAD + C)),      # conv3 (heads fused)
    ]
    out_specs = (
        pl.BlockSpec((ROW_TILE, C), lambda i: (i, 0)),         # seed features
        pl.BlockSpec((ROW_TILE, XYZ_PAD), lambda i: (i, 0)),   # vote xyz (padded)
        pl.BlockSpec((ROW_TILE, C), lambda i: (i, 0)),         # vote features (L2 norm'd)
    )
    out_shape = (
        jax.ShapeDtypeStruct((BN, C), jnp.float32),
        jax.ShapeDtypeStruct((BN, XYZ_PAD), jnp.float32),
        jax.ShapeDtypeStruct((BN, C), jnp.float32),
    )

    seed, vxyzp, vfeat = pl.pallas_call(
        _vgen_kernel,
        out_shape=out_shape,
        grid=(n_tiles,),
        in_specs=in_specs,
        out_specs=out_specs,
        compiler_params=pltpu.CompilerParams(dimension_semantics=("parallel",)),
    )(xyzp, bw, bb, w1, b1, w2, b2, w3, b3)

    seed = seed.reshape(B, N, C)
    vote_xyz = vxyzp[:, :3].reshape(B, N, 3)
    vote_feat = vfeat.reshape(B, N, C)
    return seed, vote_xyz, vote_feat


# -------------------------- parameter construction ------------------------- #
def _fold_bn(w, b, gamma, beta, mean, var, eps=1e-5):
    scale = gamma * jax.lax.rsqrt(var + eps)
    return w * scale[None, :], b * scale + (beta - mean * scale)


def init_params(key, c=SEED_DIM):
    ks = jax.random.split(key, 12)

    def conv_w(k, cin, cout):
        bound = 1.0 / jnp.sqrt(jnp.float32(cin))
        return jax.random.uniform(k, (cin, cout), jnp.float32, -bound, bound)

    # VotingModule: conv1/bn1, conv2/bn2, conv3 -> (3 + C) * vote_factor channels
    w1 = conv_w(ks[0], c, c); b1 = jax.random.uniform(ks[1], (1, c), jnp.float32, -0.01, 0.01)
    w2 = conv_w(ks[2], c, c); b2 = jax.random.uniform(ks[3], (1, c), jnp.float32, -0.01, 0.01)
    w3 = conv_w(ks[4], c, 3 + c); b3 = jax.random.uniform(ks[5], (1, 3 + c), jnp.float32, -0.01, 0.01)

    g1 = 1.0 + 0.05 * jax.random.normal(ks[6], (c,)); be1 = 0.01 * jax.random.normal(ks[7], (c,))
    g2 = 1.0 + 0.05 * jax.random.normal(ks[8], (c,)); be2 = 0.01 * jax.random.normal(ks[9], (c,))
    zero = jnp.zeros((c,), jnp.float32); one = jnp.ones((c,), jnp.float32)

    w1f, b1f = _fold_bn(w1, b1, g1, be1, zero, one)
    w2f, b2f = _fold_bn(w2, b2, g2, be2, zero, one)

    # Fuse conv3 heads: pad the 3-wide xyz-offset head to a full 128-lane tile.
    w3x = jnp.pad(w3[:, :3], ((0, 0), (0, XYZ_PAD - 3)))
    b3x = jnp.pad(b3[:, :3], ((0, 0), (0, XYZ_PAD - 3)))
    w3c = jnp.concatenate([w3x, w3[:, 3:]], axis=1)            # (c, 128 + c)
    b3c = jnp.concatenate([b3x, b3[:, 3:]], axis=1)            # (1, 128 + c)

    # Simplified backbone feature lift: 3 -> c, contraction padded to 128.
    backbone_w = 0.5 * jax.random.normal(ks[10], (3, c), jnp.float32)
    backbone_b = 0.01 * jax.random.normal(ks[11], (1, c), jnp.float32)
    bw = jnp.pad(backbone_w, ((0, XYZ_PAD - 3), (0, 0)))       # (128, c)

    vgen = (bw.astype(jnp.bfloat16), backbone_b.astype(jnp.float32),
            w1f.astype(jnp.bfloat16), b1f.astype(jnp.float32),
            w2f.astype(jnp.bfloat16), b2f.astype(jnp.float32),
            w3c.astype(jnp.bfloat16), b3c.astype(jnp.float32))
    return {"vgen": vgen}


# ------------------------------- full forward ------------------------------ #
def votepose_forward(point_clouds, params):
    end_points = {}
    B = point_clouds.shape[0]

    # TODO(synk): Pointnet2Backbone (farthest-point sampling, ball query, grouping,
    # SA/FP layers) has no clean Pallas equivalent; stand-in selects the first NUM_SEED
    # points as seeds and lifts xyz -> SEED_DIM features with a fixed linear map,
    # fused into the Pallas kernel below.
    xyz = point_clouds[:, :NUM_SEED, :3]                       # (B, N, 3)
    inds = jnp.tile(jnp.arange(NUM_SEED, dtype=jnp.int32)[None], (B, 1))

    feats, vote_xyz, vote_feat = votepose_core(xyz, params)

    end_points["fp2_xyz"] = xyz
    end_points["fp2_features"] = feats          # channels-last layout
    end_points["fp2_inds"] = inds
    end_points["seed_inds"] = inds
    end_points["seed_xyz"] = xyz
    end_points["seed_features"] = feats

    # The original model calls self.vgen twice with identical inputs and identical
    # weights, so object and part votes are numerically identical; compute once and
    # reuse the outputs (XLA does not CSE Pallas custom calls).
    end_points["vote_object_xyz"] = vote_xyz
    end_points["vote_object_features"] = vote_feat     # already L2-normalized in-kernel
    end_points["vote_part_xyz"] = vote_xyz
    end_points["vote_part_features"] = vote_feat

    # TODO(synk): ProposalModule (vote_fps sampling + grouping + proposal MLP head)
    # depends on FPS / ball-query and is not translated.
    return end_points


if __name__ == "__main__":
    key = jax.random.PRNGKey(0)
    pkey, dkey = jax.random.split(key)

    params = init_params(pkey)
    point_clouds = jax.random.normal(dkey, (2, NUM_POINTS, 3), jnp.float32)

    end_points = jax.jit(votepose_forward)(point_clouds, params)
    jax.block_until_ready(end_points)

    assert end_points["vote_object_xyz"].shape == (2, NUM_SEED, 3)
    assert end_points["vote_object_features"].shape == (2, NUM_SEED, SEED_DIM)
    assert end_points["vote_part_xyz"].shape == (2, NUM_SEED, 3)
    # sanity: features are unit-norm along the channel axis
    norms = jnp.linalg.norm(end_points["vote_object_features"], axis=-1)
    assert bool(jnp.all(jnp.abs(norms - 1.0) < 1e-3))
    print("KERNEL_OK")
</pallas_src>

<mosaic_0001>
module attributes {stable_mosaic.version = 11 : i64} {
  func.func @_vgen_kernel(%arg0: i32, %arg1: memref<128x128xf32, #tpu.memory_space<vmem>>, %arg2: memref<128x256xbf16, #tpu.memory_space<vmem>>, %arg3: memref<1x256xf32, #tpu.memory_space<vmem>>, %arg4: memref<256x256xbf16, #tpu.memory_space<vmem>>, %arg5: memref<1x256xf32, #tpu.memory_space<vmem>>, %arg6: memref<256x256xbf16, #tpu.memory_space<vmem>>, %arg7: memref<1x256xf32, #tpu.memory_space<vmem>>, %arg8: memref<256x384xbf16, #tpu.memory_space<vmem>>, %arg9: memref<1x384xf32, #tpu.memory_space<vmem>>, %arg10: memref<128x256xf32, #tpu.memory_space<vmem>>, %arg11: memref<128x128xf32, #tpu.memory_space<vmem>>, %arg12: memref<128x256xf32, #tpu.memory_space<vmem>>) attributes {dimension_semantics = [#tpu.dimension_semantics<parallel>], iteration_bounds = array<i64: 2>, scalar_prefetch = 0 : i64, scratch_operands = 0 : i64, tpu.core_type = #tpu.core_type<tc>, window_params = [{transform_indices = @transform_0, window_bounds = array<i64: 128, 128>}, {pipeline_mode = #tpu.pipeline_mode<synchronous>, transform_indices = @transform_1, window_bounds = array<i64: 128, 256>}, {pipeline_mode = #tpu.pipeline_mode<synchronous>, transform_indices = @transform_2, window_bounds = array<i64: 1, 256>}, {pipeline_mode = #tpu.pipeline_mode<synchronous>, transform_indices = @transform_3, window_bounds = array<i64: 256, 256>}, {pipeline_mode = #tpu.pipeline_mode<synchronous>, transform_indices = @transform_4, window_bounds = array<i64: 1, 256>}, {pipeline_mode = #tpu.pipeline_mode<synchronous>, transform_indices = @transform_5, window_bounds = array<i64: 256, 256>}, {pipeline_mode = #tpu.pipeline_mode<synchronous>, transform_indices = @transform_6, window_bounds = array<i64: 1, 256>}, {pipeline_mode = #tpu.pipeline_mode<synchronous>, transform_indices = @transform_7, window_bounds = array<i64: 256, 384>}, {pipeline_mode = #tpu.pipeline_mode<synchronous>, transform_indices = @transform_8, window_bounds = array<i64: 1, 384>}, {transform_indices = @transform_9, window_bounds = array<i64: 128, 256>}, {transform_indices = @transform_10, window_bounds = array<i64: 128, 128>}, {transform_indices = @transform_11, window_bounds = array<i64: 128, 256>}]} {
    %c0 = arith.constant 0 : index
    %c0_0 = arith.constant 0 : index
    %0 = vector.load %arg1[%c0, %c0_0] : memref<128x128xf32, #tpu.memory_space<vmem>>, vector<128x128xf32>
    %1 = arith.truncf %0 : vector<128x128xf32> to vector<128x128xbf16>
    %c0_1 = arith.constant 0 : index
    %c0_2 = arith.constant 0 : index
    %2 = vector.load %arg2[%c0_1, %c0_2] : memref<128x256xbf16, #tpu.memory_space<vmem>>, vector<128x256xbf16>
    %cst = arith.constant dense<0.000000e+00> : vector<128x256xf32>
    %3 = tpu.matmul %1, %2, %cst {dimension_numbers = #tpu.dot_dimension_numbers<[1], [0], [0], [1], [0, 0, 1, 1], [], []>} : vector<128x128xbf16>, vector<128x256xbf16>, vector<128x256xf32> -> vector<128x256xf32>
    %c0_3 = arith.constant 0 : index
    %c0_4 = arith.constant 0 : index
    %4 = vector.load %arg3[%c0_3, %c0_4] : memref<1x256xf32, #tpu.memory_space<vmem>>, vector<1x256xf32>
    %5 = vector.broadcast %4 : vector<1x256xf32> to vector<128x256xf32>
    %6 = arith.addf %3, %5 : vector<128x256xf32>
    %cst_5 = arith.constant 0.000000e+00 : f32
    %7 = vector.broadcast %cst_5 : f32 to vector<128x256xf32>
    %8 = arith.maximumf %6, %7 : vector<128x256xf32>
    %c0_6 = arith.constant 0 : index
    %c0_7 = arith.constant 0 : index
    %9 = vector.load %arg10[%c0_6, %c0_7] : memref<128x256xf32, #tpu.memory_space<vmem>>, vector<128x256xf32>
    tpu.vector_store %arg10[%c0_6, %c0_7], %8 {strides = array<i32>} : memref<128x256xf32, #tpu.memory_space<vmem>>, vector<128x256xf32>,
    %10 = arith.truncf %8 : vector<128x256xf32> to vector<128x256xbf16>
    %c0_8 = arith.constant 0 : index
    %c0_9 = arith.constant 0 : index
    %11 = vector.load %arg4[%c0_8, %c0_9] : memref<256x256xbf16, #tpu.memory_space<vmem>>, vector<256x256xbf16>
    %cst_10 = arith.constant dense<0.000000e+00> : vector<128x256xf32>
    %12 = tpu.matmul %10, %11, %cst_10 {dimension_numbers = #tpu.dot_dimension_numbers<[1], [0], [0], [1], [0, 0, 1, 1], [], []>} : vector<128x256xbf16>, vector<256x256xbf16>, vector<128x256xf32> -> vector<128x256xf32>
    %c0_11 = arith.constant 0 : index
    %c0_12 = arith.constant 0 : index
    %13 = vector.load %arg5[%c0_11, %c0_12] : memref<1x256xf32, #tpu.memory_space<vmem>>, vector<1x256xf32>
    %14 = vector.broadcast %13 : vector<1x256xf32> to vector<128x256xf32>
    %15 = arith.addf %12, %14 : vector<128x256xf32>
    %cst_13 = arith.constant 0.000000e+00 : f32
    %16 = vector.broadcast %cst_13 : f32 to vector<128x256xf32>
    %17 = arith.maximumf %15, %16 : vector<128x256xf32>
    %18 = arith.truncf %17 : vector<128x256xf32> to vector<128x256xbf16>
    %c0_14 = arith.constant 0 : index
    %c0_15 = arith.constant 0 : index
    %19 = vector.load %arg6[%c0_14, %c0_15] : memref<256x256xbf16, #tpu.memory_space<vmem>>, vector<256x256xbf16>
    %cst_16 = arith.constant dense<0.000000e+00> : vector<128x256xf32>
    %20 = tpu.matmul %18, %19, %cst_16 {dimension_numbers = #tpu.dot_dimension_numbers<[1], [0], [0], [1], [0, 0, 1, 1], [], []>} : vector<128x256xbf16>, vector<256x256xbf16>, vector<128x256xf32> -> vector<128x256xf32>
    %c0_17 = arith.constant 0 : index
    %c0_18 = arith.constant 0 : index
    %21 = vector.load %arg7[%c0_17, %c0_18] : memref<1x256xf32, #tpu.memory_space<vmem>>, vector<1x256xf32>
    %22 = vector.broadcast %21 : vector<1x256xf32> to vector<128x256xf32>
    %23 = arith.addf %20, %22 : vector<128x256xf32>
    %cst_19 = arith.constant 0.000000e+00 : f32
    %24 = vector.broadcast %cst_19 : f32 to vector<128x256xf32>
    %25 = arith.maximumf %23, %24 : vector<128x256xf32>
    %26 = arith.truncf %25 : vector<128x256xf32> to vector<128x256xbf16>
    %c0_20 = arith.constant 0 : index
    %c0_21 = arith.constant 0 : index
    %27 = vector.load %arg8[%c0_20, %c0_21] : memref<256x384xbf16, #tpu.memory_space<vmem>>, vector<256x384xbf16>
    %cst_22 = arith.constant dense<0.000000e+00> : vector<128x384xf32>
    %28 = tpu.matmul %26, %27, %cst_22 {dimension_numbers = #tpu.dot_dimension_numbers<[1], [0], [0], [1], [0, 0, 1, 1], [], []>} : vector<128x256xbf16>, vector<256x384xbf16>, vector<128x384xf32> -> vector<128x384xf32>
    %c0_23 = arith.constant 0 : index
    %c0_24 = arith.constant 0 : index
    %29 = vector.load %arg9[%c0_23, %c0_24] : memref<1x384xf32, #tpu.memory_space<vmem>>, vector<1x384xf32>
    %30 = vector.broadcast %29 : vector<1x384xf32> to vector<128x384xf32>
    %31 = arith.addf %28, %30 : vector<128x384xf32>
    %32 = vector.extract_strided_slice %31 {offsets = [0, 0], sizes = [128, 128], strides = [1, 1]} : vector<128x384xf32> to vector<128x128xf32>
    %33 = vector.extract_strided_slice %31 {offsets = [0, 128], sizes = [128, 256], strides = [1, 1]} : vector<128x384xf32> to vector<128x256xf32>
    %34 = arith.addf %0, %32 : vector<128x128xf32>
    %c0_25 = arith.constant 0 : index
    %c0_26 = arith.constant 0 : index
    %35 = vector.load %arg11[%c0_25, %c0_26] : memref<128x128xf32, #tpu.memory_space<vmem>>, vector<128x128xf32>
    tpu.vector_store %arg11[%c0_25, %c0_26], %34 {strides = array<i32>} : memref<128x128xf32, #tpu.memory_space<vmem>>, vector<128x128xf32>,
    %36 = arith.addf %8, %33 : vector<128x256xf32>
    %37 = arith.mulf %36, %36 : vector<128x256xf32>
    %cst_27 = arith.constant dense<0.000000e+00> : vector<128xf32>
    %38 = vector.multi_reduction <add>, %37, %cst_27 [1] : vector<128x256xf32> to vector<128xf32>
    %39 = vector.shape_cast %38 : vector<128xf32> to vector<128x1xf32>
    %cst_28 = arith.constant 9.99999996E-13 : f32
    %40 = vector.broadcast %cst_28 : f32 to vector<128x1xf32>
    %41 = arith.addf %39, %40 : vector<128x1xf32>
    %42 = math.rsqrt %41 : vector<128x1xf32>
    %43 = vector.broadcast %42 : vector<128x1xf32> to vector<128x256xf32>
    %44 = arith.mulf %36, %43 : vector<128x256xf32>
    %c0_29 = arith.constant 0 : index
    %c0_30 = arith.constant 0 : index
    %45 = vector.load %arg12[%c0_29, %c0_30] : memref<128x256xf32, #tpu.memory_space<vmem>>, vector<128x256xf32>
    tpu.vector_store %arg12[%c0_29, %c0_30], %44 {strides = array<i32>} : memref<128x256xf32, #tpu.memory_space<vmem>>, vector<128x256xf32>,
    return
  }
  func.func @transform_0(%arg0: i32) -> (i32, i32) {
    %c0_i32 = arith.constant 0 : i32
    %c0_i32_0 = arith.constant 0 : i32
    return %arg0, %c0_i32 : i32, i32
  }
  func.func @transform_1(%arg0: i32) -> (i32, i32) {
    %c0_i32 = arith.constant 0 : i32
    %c0_i32_0 = arith.constant 0 : i32
    %c0_i32_1 = arith.constant 0 : i32
    return %c0_i32, %c0_i32_0 : i32, i32
  }
  func.func @transform_2(%arg0: i32) -> (i32, i32) {
    %c0_i32 = arith.constant 0 : i32
    %c0_i32_0 = arith.constant 0 : i32
    %c0_i32_1 = arith.constant 0 : i32
    return %c0_i32, %c0_i32_0 : i32, i32
  }
  func.func @transform_3(%arg0: i32) -> (i32, i32) {
    %c0_i32 = arith.constant 0 : i32
    %c0_i32_0 = arith.constant 0 : i32
    %c0_i32_1 = arith.constant 0 : i32
    return %c0_i32, %c0_i32_0 : i32, i32
  }
  func.func @transform_4(%arg0: i32) -> (i32, i32) {
    %c0_i32 = arith.constant 0 : i32
    %c0_i32_0 = arith.constant 0 : i32
    %c0_i32_1 = arith.constant 0 : i32
    return %c0_i32, %c0_i32_0 : i32, i32
  }
  func.func @transform_5(%arg0: i32) -> (i32, i32) {
    %c0_i32 = arith.constant 0 : i32
    %c0_i32_0 = arith.constant 0 : i32
    %c0_i32_1 = arith.constant 0 : i32
    return %c0_i32, %c0_i32_0 : i32, i32
  }
  func.func @transform_6(%arg0: i32) -> (i32, i32) {
    %c0_i32 = arith.constant 0 : i32
    %c0_i32_0 = arith.constant 0 : i32
    %c0_i32_1 = arith.constant 0 : i32
    return %c0_i32, %c0_i32_0 : i32, i32
  }
  func.func @transform_7(%arg0: i32) -> (i32, i32) {
    %c0_i32 = arith.constant 0 : i32
    %c0_i32_0 = arith.constant 0 : i32
    %c0_i32_1 = arith.constant 0 : i32
    return %c0_i32, %c0_i32_0 : i32, i32
  }
  func.func @transform_8(%arg0: i32) -> (i32, i32) {
    %c0_i32 = arith.constant 0 : i32
    %c0_i32_0 = arith.constant 0 : i32
    %c0_i32_1 = arith.constant 0 : i32
    return %c0_i32, %c0_i32_0 : i32, i32
  }
  func.func @transform_9(%arg0: i32) -> (i32, i32) {
    %c0_i32 = arith.constant 0 : i32
    %c0_i32_0 = arith.constant 0 : i32
    return %arg0, %c0_i32 : i32, i32
  }
  func.func @transform_10(%arg0: i32) -> (i32, i32) {
    %c0_i32 = arith.constant 0 : i32
    %c0_i32_0 = arith.constant 0 : i32
    return %arg0, %c0_i32 : i32, i32
  }
  func.func @transform_11(%arg0: i32) -> (i32, i32) {
    %c0_i32 = arith.constant 0 : i32
    %c0_i32_0 = arith.constant 0 : i32
    return %arg0, %c0_i32 : i32, i32
  }
}

</mosaic_0001>

<llo_original>
// kernel: votepose_forward.1
$region0: #{votepose_forward.1}
  #allocation0 [shape = 'u32[]', space=smem, size = 0x4, offset = 0x4, fixed_abs, tag = 'smem constant byte address 0x4 - core index']
  #allocation1 [shape = 'u32[144,128]{1,0:T(1,128)}', space=vmem, size = 0x12000, scoped, tag = 'internal scratch']
  %s0 = inlined_call_operand.vmem [shape: f32[256,128], index: 0, kind: input, shape index: {}]
  %s1 = inlined_call_operand.vmem [shape: bf16[128,256], index: 1, kind: input, shape index: {}]
  %s2 = inlined_call_operand.vmem [shape: f32[1,256], index: 2, kind: input, shape index: {}]
  %s3 = inlined_call_operand.vmem [shape: bf16[256,256], index: 3, kind: input, shape index: {}]
  %s4 = inlined_call_operand.vmem [shape: f32[1,256], index: 4, kind: input, shape index: {}]
  %s5 = inlined_call_operand.hbm [shape: bf16[256,256], index: 5, kind: input, shape index: {}]
  %s6 = inlined_call_operand.vmem [shape: f32[1,256], index: 6, kind: input, shape index: {}]
  %s7 = inlined_call_operand.vmem [shape: bf16[256,384], index: 7, kind: input, shape index: {}]
  %s8 = inlined_call_operand.vmem [shape: f32[1,384], index: 8, kind: input, shape index: {}]
  %s9 = inlined_call_operand.vmem [shape: f32[256,256], index: 9, kind: output, shape index: {0}]
  %s10 = inlined_call_operand.vmem [shape: f32[256,128], index: 10, kind: output, shape index: {1}]
  %s11 = inlined_call_operand.vmem [shape: f32[256,256], index: 11, kind: output, shape index: {2}]
  %12 = xla_tuple %s9, %s10, %s11
  %s13 = sld [smem:[#allocation0]]
  $region89: #{votepose_forward.1} parent=0
    _
  %s15 = ssub.s32 1, %s13
  %s16 = scalar_select 0, %s15, %s13
  $region1: #{votepose_forward.1} parent=0
    #allocation2 [shape = 'u8[131072]{0}', space=vmem, size = 0x20000, scoped, tag = 'input window, operand 5, single buffered']
    #allocation3 [shape = 's32[2]{0}', space=sflag, size = 0x8, scoped, tag = 'scoped memory for votepose_forward.1']
    %17 = vsyncpa [#allocation3], 0
    loop: start=0, step=1, limit=4
    $region2: #{votepose_forward.1} parent=1 // loop_pre_header
      _
    $region3: #{votepose_forward.1} parent=1 // loop_header
      %s19 = sphi 0, %s23
      %p20 = scmp.ge.s32.totalorder %s19, 4
      %s29 = sphi 0, %s31
      %s32 = sphi 0, %s29
      %s33 = sphi 0, %s32
      %s49 = sphi 0, %s33
      %s53 = sphi 0, %s53
      %s55 = sphi 0, %s53
      %s56 = sphi 0, %s55
      %s70 = sphi 0, %s56
      %s74 = sphi 0, %s74
      %s76 = sphi 0, %s74
      %s77 = sphi 0, %s76
      %s91 = sphi 0, %s77
      %s95 = sphi 0, %s95
      %s97 = sphi 0, %s95
      %s98 = sphi 0, %s97
      %s112 = sphi 0, %s98
      %s116 = sphi 0, %s116
      %s118 = sphi 0, %s116
      %s119 = sphi 0, %s118
      %s133 = sphi 0, %s119
      %s137 = sphi 0, %s137
      %s139 = sphi 0, %s137
      %s140 = sphi 0, %s139
      %s154 = sphi 0, %s140
      %s158 = sphi 0, %s158
      %s160 = sphi 0, %s158
      %s161 = sphi 0, %s160
      %s175 = sphi 0, %s161
      %s179 = sphi 0, %s179
      %s181 = sphi 0, %s179
      %s182 = sphi 0, %s181
      %s196 = sphi 0, %s182
      %s200 = sphi 0, %s200
      %s202 = sphi 0, %s200
      %s203 = sphi 0, %s202
      %s217 = sphi 0, %s203
      %s223 = sphi 0, %s225
      %s226 = sphi 0, %s223
      %s227 = sphi 0, %s226
      %s243 = sphi 0, %s227
      %s249 = sphi 0, %s251
      %s252 = sphi 0, %s249
      %s253 = sphi 0, %s252
      %s269 = sphi 0, %s253
      %s275 = sphi 0, %s277
      %s278 = sphi 0, %s275
      %s279 = sphi 0, %s278
      %s295 = sphi 0, %s279
    $region4: #{votepose_forward.1} parent=1 // loop_header_branch
      %22 = sbr.rel (%p20) target = $region8
    $region5: #{votepose_forward.1} parent=1 // loop_body
      %s24 = ssub.s32 %s19, 1
      %s25 = ssub.s32 %s19, 2
      %s26 = sadd.s32 %s19, 1
      %s27 = ssub.s32 %s19, %s26
      %p28 = scmp.eq.s32.totalorder %s27, 0
      %s30 = sadd.s32 %s29, 1
      %s31 = scalar_select %p28, %s29, %s30
      %p34 = pneg %p28
      %p35 = scmp.eq.s32.totalorder %s19, 1
      %p36 = por %p34, %p35
      %p37 = scmp.ne.s32.totalorder %s29, %s32
      %p38 = scmp.eq.s32.totalorder %s19, 0
      %p39 = por %p37, %p38
      %p40 = scmp.ne.s32.totalorder %s29, %s32
      %p41 = scmp.eq.s32.totalorder %s24, 1
      %p42 = por %p40, %p41
      %p43 = scmp.ne.s32.totalorder %s32, %s33
      %p44 = scmp.eq.s32.totalorder %s24, 0
      %p45 = por %p43, %p44
      %p46 = scmp.ne.s32.totalorder %s32, %s33
      %p47 = scmp.eq.s32.totalorder %s25, 1
      %p48 = por %p46, %p47
      %p50 = scmp.ne.s32.totalorder %s33, %s49
      %p51 = scmp.eq.s32.totalorder %s25, 0
      %p52 = por %p50, %p51
      %s54 = sadd.s32 %s53, 1
      %p57 = scmp.eq.s32.totalorder %s19, 1
      %p58 = scmp.ne.s32.totalorder %s53, %s55
      %p59 = scmp.eq.s32.totalorder %s19, 0
      %p60 = por %p58, %p59
      %p61 = scmp.ne.s32.totalorder %s53, %s55
      %p62 = scmp.eq.s32.totalorder %s24, 1
      %p63 = por %p61, %p62
      %p64 = scmp.ne.s32.totalorder %s55, %s56
      %p65 = scmp.eq.s32.totalorder %s24, 0
      %p66 = por %p64, %p65
      %p67 = scmp.ne.s32.totalorder %s55, %s56
      %p68 = scmp.eq.s32.totalorder %s25, 1
      %p69 = por %p67, %p68
      %p71 = scmp.ne.s32.totalorder %s56, %s70
      %p72 = scmp.eq.s32.totalorder %s25, 0
      %p73 = por %p71, %p72
      %s75 = sadd.s32 %s74, 1
      %p78 = scmp.eq.s32.totalorder %s19, 1
      %p79 = scmp.ne.s32.totalorder %s74, %s76
      %p80 = scmp.eq.s32.totalorder %s19, 0
      %p81 = por %p79, %p80
      %p82 = scmp.ne.s32.totalorder %s74, %s76
      %p83 = scmp.eq.s32.totalorder %s24, 1
      %p84 = por %p82, %p83
      %p85 = scmp.ne.s32.totalorder %s76, %s77
      %p86 = scmp.eq.s32.totalorder %s24, 0
      %p87 = por %p85, %p86
      %p88 = scmp.ne.s32.totalorder %s76, %s77
      %p89 = scmp.eq.s32.totalorder %s25, 1
      %p90 = por %p88, %p89
      %p92 = scmp.ne.s32.totalorder %s77, %s91
      %p93 = scmp.eq.s32.totalorder %s25, 0
      %p94 = por %p92, %p93
      %s96 = sadd.s32 %s95, 1
      %p99 = scmp.eq.s32.totalorder %s19, 1
      %p100 = scmp.ne.s32.totalorder %s95, %s97
      %p101 = scmp.eq.s32.totalorder %s19, 0
      %p102 = por %p100, %p101
      %p103 = scmp.ne.s32.totalorder %s95, %s97
      %p104 = scmp.eq.s32.totalorder %s24, 1
      %p105 = por %p103, %p104
      %p106 = scmp.ne.s32.totalorder %s97, %s98
      %p107 = scmp.eq.s32.totalorder %s24, 0
      %p108 = por %p106, %p107
      %p109 = scmp.ne.s32.totalorder %s97, %s98
      %p110 = scmp.eq.s32.totalorder %s25, 1
      %p111 = por %p109, %p110
      %p113 = scmp.ne.s32.totalorder %s98, %s112
      %p114 = scmp.eq.s32.totalorder %s25, 0
      %p115 = por %p113, %p114
      %s117 = sadd.s32 %s116, 1
      %p120 = scmp.eq.s32.totalorder %s19, 1
      %p121 = scmp.ne.s32.totalorder %s116, %s118
      %p122 = scmp.eq.s32.totalorder %s19, 0
      %p123 = por %p121, %p122
      %p124 = scmp.ne.s32.totalorder %s116, %s118
      %p125 = scmp.eq.s32.totalorder %s24, 1
      %p126 = por %p124, %p125
      %p127 = scmp.ne.s32.totalorder %s118, %s119
      %p128 = scmp.eq.s32.totalorder %s24, 0
      %p129 = por %p127, %p128
      %p130 = scmp.ne.s32.totalorder %s118, %s119
      %p131 = scmp.eq.s32.totalorder %s25, 1
      %p132 = por %p130, %p131
      %p134 = scmp.ne.s32.totalorder %s119, %s133
      %p135 = scmp.eq.s32.totalorder %s25, 0
      %p136 = por %p134, %p135
      %s138 = sadd.s32 %s137, 1
      %p141 = scmp.eq.s32.totalorder %s19, 1
      %p142 = scmp.ne.s32.totalorder %s137, %s139
      %p143 = scmp.eq.s32.totalorder %s19, 0
      %p144 = por %p142, %p143
      %p145 = scmp.ne.s32.totalorder %s137, %s139
      %p146 = scmp.eq.s32.totalorder %s24, 1
      %p147 = por %p145, %p146
      %p148 = scmp.ne.s32.totalorder %s139, %s140
      %p149 = scmp.eq.s32.totalorder %s24, 0
      %p150 = por %p148, %p149
      %p151 = scmp.ne.s32.totalorder %s139, %s140
      %p152 = scmp.eq.s32.totalorder %s25, 1
      %p153 = por %p151, %p152
      %p155 = scmp.ne.s32.totalorder %s140, %s154
      %p156 = scmp.eq.s32.totalorder %s25, 0
      %p157 = por %p155, %p156
      %s159 = sadd.s32 %s158, 1
      %p162 = scmp.eq.s32.totalorder %s19, 1
      %p163 = scmp.ne.s32.totalorder %s158, %s160
      %p164 = scmp.eq.s32.totalorder %s19, 0
      %p165 = por %p163, %p164
      %p166 = scmp.ne.s32.totalorder %s158, %s160
      %p167 = scmp.eq.s32.totalorder %s24, 1
      %p168 = por %p166, %p167
      %p169 = scmp.ne.s32.totalorder %s160, %s161
      %p170 = scmp.eq.s32.totalorder %s24, 0
      %p171 = por %p169, %p170
      %p172 = scmp.ne.s32.totalorder %s160, %s161
      %p173 = scmp.eq.s32.totalorder %s25, 1
      %p174 = por %p172, %p173
      %p176 = scmp.ne.s32.totalorder %s161, %s175
      %p177 = scmp.eq.s32.totalorder %s25, 0
      %p178 = por %p176, %p177
      %s180 = sadd.s32 %s179, 1
      %p183 = scmp.eq.s32.totalorder %s19, 1
      %p184 = scmp.ne.s32.totalorder %s179, %s181
      %p185 = scmp.eq.s32.totalorder %s19, 0
      %p186 = por %p184, %p185
      %p187 = scmp.ne.s32.totalorder %s179, %s181
      %p188 = scmp.eq.s32.totalorder %s24, 1
      %p189 = por %p187, %p188
      %p190 = scmp.ne.s32.totalorder %s181, %s182
      %p191 = scmp.eq.s32.totalorder %s24, 0
      %p192 = por %p190, %p191
      %p193 = scmp.ne.s32.totalorder %s181, %s182
      %p194 = scmp.eq.s32.totalorder %s25, 1
      %p195 = por %p193, %p194
      %p197 = scmp.ne.s32.totalorder %s182, %s196
      %p198 = scmp.eq.s32.totalorder %s25, 0
      %p199 = por %p197, %p198
      %s201 = sadd.s32 %s200, 1
      %p204 = scmp.eq.s32.totalorder %s19, 1
      %p205 = scmp.ne.s32.totalorder %s200, %s202
      %p206 = scmp.eq.s32.totalorder %s19, 0
      %p207 = por %p205, %p206
      %p208 = scmp.ne.s32.totalorder %s200, %s202
      %p209 = scmp.eq.s32.totalorder %s24, 1
      %p210 = por %p208, %p209
      %p211 = scmp.ne.s32.totalorder %s202, %s203
      %p212 = scmp.eq.s32.totalorder %s24, 0
      %p213 = por %p211, %p212
      %p214 = scmp.ne.s32.totalorder %s202, %s203
      %p215 = scmp.eq.s32.totalorder %s25, 1
      %p216 = por %p214, %p215
      %p218 = scmp.ne.s32.totalorder %s203, %s217
      %p219 = scmp.eq.s32.totalorder %s25, 0
      %p220 = por %p218, %p219
      %s221 = ssub.s32 %s19, %s26
      %p222 = scmp.eq.s32.totalorder %s221, 0
      %s224 = sadd.s32 %s223, 1
      %s225 = scalar_select %p222, %s223, %s224
      %p228 = pneg %p222
      %p229 = scmp.eq.s32.totalorder %s19, 1
      %p230 = por %p228, %p229
      %p231 = scmp.ne.s32.totalorder %s223, %s226
      %p232 = scmp.eq.s32.totalorder %s19, 0
      %p233 = por %p231, %p232
      %p234 = scmp.ne.s32.totalorder %s223, %s226
      %p235 = scmp.eq.s32.totalorder %s24, 1
      %p236 = por %p234, %p235
      %p237 = scmp.ne.s32.totalorder %s226, %s227
      %p238 = scmp.eq.s32.totalorder %s24, 0
      %p239 = por %p237, %p238
      %p240 = scmp.ne.s32.totalorder %s226, %s227
      %p241 = scmp.eq.s32.totalorder %s25, 1
      %p242 = por %p240, %p241
      %p244 = scmp.ne.s32.totalorder %s227, %s243
      %p245 = scmp.eq.s32.totalorder %s25, 0
      %p246 = por %p244, %p245
      %s247 = ssub.s32 %s19, %s26
      %p248 = scmp.eq.s32.totalorder %s247, 0
      %s250 = sadd.s32 %s249, 1
      %s251 = scalar_select %p248, %s249, %s250
      %p254 = pneg %p248
      %p255 = scmp.eq.s32.totalorder %s19, 1
      %p256 = por %p254, %p255
      %p257 = scmp.ne.s32.totalorder %s249, %s252
      %p258 = scmp.eq.s32.totalorder %s19, 0
      %p259 = por %p257, %p258
      %p260 = scmp.ne.s32.totalorder %s249, %s252
      %p261 = scmp.eq.s32.totalorder %s24, 1
      %p262 = por %p260, %p261
      %p263 = scmp.ne.s32.totalorder %s252, %s253
      %p264 = scmp.eq.s32.totalorder %s24, 0
      %p265 = por %p263, %p264
      %p266 = scmp.ne.s32.totalorder %s252, %s253
      %p267 = scmp.eq.s32.totalorder %s25, 1
      %p268 = por %p266, %p267
      %p270 = scmp.ne.s32.totalorder %s253, %s269
      %p271 = scmp.eq.s32.totalorder %s25, 0
      %p272 = por %p270, %p271
      %s273 = ssub.s32 %s19, %s26
      %p274 = scmp.eq.s32.totalorder %s273, 0
      %s276 = sadd.s32 %s275, 1
      %s277 = scalar_select %p274, %s275, %s276
      %p280 = pneg %p274
      %p281 = scmp.eq.s32.totalorder %s19, 1
      %p282 = por %p280, %p281
      %p283 = scmp.ne.s32.totalorder %s275, %s278
      %p284 = scmp.eq.s32.totalorder %s19, 0
      %p285 = por %p283, %p284
      %p286 = scmp.ne.s32.totalorder %s275, %s278
      %p287 = scmp.eq.s32.totalorder %s24, 1
      %p288 = por %p286, %p287
      %p289 = scmp.ne.s32.totalorder %s278, %s279
      %p290 = scmp.eq.s32.totalorder %s24, 0
      %p291 = por %p289, %p290
      %p292 = scmp.ne.s32.totalorder %s278, %s279
      %p293 = scmp.eq.s32.totalorder %s25, 1
      %p294 = por %p292, %p293
      %p296 = scmp.ne.s32.totalorder %s279, %s295
      %p297 = scmp.eq.s32.totalorder %s25, 0
      %p298 = por %p296, %p297
      %p299 = scmp.le.s32.totalorder 1, %s19
      %p300 = scmp.lt.s32.totalorder %s19, 3
      %p301 = pnand %p299, %p300
      %p302 = pneg %p301
      // Predicated region
      $region9: #{votepose_forward.1} parent=5 // pred_check
        _
      $region10: #{votepose_forward.1} parent=5 // pred_check_branch
        %304 = sbr.rel (%p301) target = $region12
      $region11: #{votepose_forward.1} parent=5 // pred_region
        %s305 = ssub.s32 %s19, 1
        // Predicated region
        $region13: #{votepose_forward.1} parent=11 // pred_check
          %p306 = pneg %p66
        $region14: #{votepose_forward.1} parent=11 // pred_check_branch
          %308 = sbr.rel (%p306) target = $region16
        $region15: #{votepose_forward.1} parent=11 // pred_region
          _
        $region16: #{votepose_forward.1} parent=11 // pred_fallthru
          _
        // Predicated region
        $region17: #{votepose_forward.1} parent=11 // pred_check
          %p309 = pneg %p87
        $region18: #{votepose_forward.1} parent=11 // pred_check_branch
          %311 = sbr.rel (%p309) target = $region20
        $region19: #{votepose_forward.1} parent=11 // pred_region
          _
        $region20: #{votepose_forward.1} parent=11 // pred_fallthru
          _
        // Predicated region
        $region21: #{votepose_forward.1} parent=11 // pred_check
          %p312 = pneg %p108
        $region22: #{votepose_forward.1} parent=11 // pred_check_branch
          %314 = sbr.rel (%p312) target = $region24
        $region23: #{votepose_forward.1} parent=11 // pred_region
          _
        $region24: #{votepose_forward.1} parent=11 // pred_fallthru
          _
        // Predicated region
        $region25: #{votepose_forward.1} parent=11 // pred_check
          %p315 = pneg %p129
        $region26: #{votepose_forward.1} parent=11 // pred_check_branch
          %317 = sbr.rel (%p315) target = $region28
        $region27: #{votepose_forward.1} parent=11 // pred_region
          _
        $region28: #{votepose_forward.1} parent=11 // pred_fallthru
          _
        // Predicated region
        $region29: #{votepose_forward.1} parent=11 // pred_check
          %p318 = pneg %p150
        $region30: #{votepose_forward.1} parent=11 // pred_check_branch
          %320 = sbr.rel (%p318) target = $region32
        $region31: #{votepose_forward.1} parent=11 // pred_region
          %s322 = ssub.s32 4096, 4096
          %323 = vsyncadd [#allocation3], %s322
          %s324 = sshll.u32 [#allocation2], 4
          %s325 = int_to_ptr.vmem [resolvable:$true] %s324
          %330 = dma.hbm_to_vmem [thread:$0]  %s5, 4096, %s325, [#allocation3], 128, 128, 8
        $region32: #{votepose_forward.1} parent=11 // pred_fallthru
          _
        // Predicated region
        $region33: #{votepose_forward.1} parent=11 // pred_check
          %p331 = pneg %p171
        $region34: #{votepose_forward.1} parent=11 // pred_check_branch
          %333 = sbr.rel (%p331) target = $region36
        $region35: #{votepose_forward.1} parent=11 // pred_region
          _
        $region36: #{votepose_forward.1} parent=11 // pred_fallthru
          _
        // Predicated region
        $region37: #{votepose_forward.1} parent=11 // pred_check
          %p334 = pneg %p192
        $region38: #{votepose_forward.1} parent=11 // pred_check_branch
          %336 = sbr.rel (%p334) target = $region40
        $region39: #{votepose_forward.1} parent=11 // pred_region
          _
        $region40: #{votepose_forward.1} parent=11 // pred_fallthru
          _
        // Predicated region
        $region41: #{votepose_forward.1} parent=11 // pred_check
          %p337 = pneg %p213
        $region42: #{votepose_forward.1} parent=11 // pred_check_branch
          %339 = sbr.rel (%p337) target = $region44
        $region43: #{votepose_forward.1} parent=11 // pred_region
          _
        $region44: #{votepose_forward.1} parent=11 // pred_fallthru
          _
      $region12: #{votepose_forward.1} parent=5 // pred_fallthru
        _
      %p340 = scmp.lt.s32.totalorder %s19, 2
      // Predicated region
      $region45: #{votepose_forward.1} parent=5 // pred_check
        %p341 = pneg %p340
      $region46: #{votepose_forward.1} parent=5 // pred_check_branch
        %343 = sbr.rel (%p341) target = $region48
      $region47: #{votepose_forward.1} parent=5 // pred_region
        // Predicated region
        $region49: #{votepose_forward.1} parent=47 // pred_check
          %p344 = pneg %p39
        $region50: #{votepose_forward.1} parent=47 // pred_check_branch
          %346 = sbr.rel (%p344) target = $region52
        $region51: #{votepose_forward.1} parent=47 // pred_region
          %s347 = smul.u32 16, %s19
          %p348 = scmp.lt.s32.totalorder %s347, 31
          %s349 = scalar_select %p348, %s347, 31
          %s350 = smul.addr %s349, 8
          %s351 = scalar_lea.vmem %s0, %s350
          %s352 = smul.u32 16, %s19
        $region52: #{votepose_forward.1} parent=47 // pred_fallthru
          _
      $region48: #{votepose_forward.1} parent=5 // pred_fallthru
        _
      %p353 = scmp.le.s32.totalorder 1, %s19
      %p354 = scmp.lt.s32.totalorder %s19, 3
      %p355 = pnand %p353, %p354
      %p356 = pneg %p355
      // Predicated region
      $region53: #{votepose_forward.1} parent=5 // pred_check
        _
      $region54: #{votepose_forward.1} parent=5 // pred_check_branch
        %358 = sbr.rel (%p355) target = $region56
      $region55: #{votepose_forward.1} parent=5 // pred_region
        %s359 = ssub.s32 %s19, 1
        // Predicated region
        $region57: #{votepose_forward.1} parent=55 // pred_check
          %p360 = pneg %p150
        $region58: #{votepose_forward.1} parent=55 // pred_check_branch
          %362 = sbr.rel (%p360) target = $region60
        $region59: #{votepose_forward.1} parent=55 // pred_region
          %363 = dma.done [#allocation3], 4096
        $region60: #{votepose_forward.1} parent=55 // pred_fallthru
          _
        %s364 = smul.u32 16, %s24
        %p365 = scmp.lt.s32.totalorder %s364, 31
        %s366 = scalar_select %p365, %s364, 31
        %s367 = smul.addr %s366, 8
        %s368 = scalar_lea.vmem %s0, %s367
        %p369 = pneg %p45
        %p370 = pneg %p42
        %p371 = pneg %p66
        %p372 = pneg %p63
        %p373 = pneg %p87
        %p374 = pneg %p84
        %p375 = pneg %p108
        %p376 = pneg %p105
        %p377 = pneg %p129
        %p378 = pneg %p126
        %p379 = pneg %p150
        %p380 = pneg %p147
        %p381 = pneg %p171
        %p382 = pneg %p168
        %p383 = pneg %p192
        %p384 = pneg %p189
        %p385 = pneg %p213
        %p386 = pneg %p210
        %p387 = pneg %p239
        %p388 = pneg %p236
        %s389 = smul.u32 16, %s24
        %p390 = scmp.lt.s32.totalorder %s389, 31
        %s391 = scalar_select %p390, %s389, 31
        %s392 = smul.addr %s391, 2
        %s393 = smul.addr %s392, 8
        %s394 = scalar_lea.vmem %s9, %s393
        %p395 = pneg %p265
        %p396 = pneg %p262
        %s397 = smul.u32 16, %s24
        %p398 = scmp.lt.s32.totalorder %s397, 31
        %s399 = scalar_select %p398, %s397, 31
        %s400 = smul.addr %s399, 8
        %s401 = scalar_lea.vmem %s10, %s400
        %p402 = pneg %p291
        %p403 = pneg %p288
        %s404 = smul.u32 16, %s24
        %p405 = scmp.lt.s32.totalorder %s404, 31
        %s406 = scalar_select %p405, %s404, 31
        %s407 = smul.addr %s406, 2
        %s408 = smul.addr %s407, 8
        %s409 = scalar_lea.vmem %s11, %s408
        %s410 = smul.u32 16, %s24
        %p411 = scmp.lt.s32.totalorder %s410, 31
        %s412 = scalar_select %p411, %s410, 31
        %s413 = smul.addr %s412, 8
        %s414 = scalar_lea.vmem %s0, %s413
        %s415 = smul.u32 16, %s24
        %s416 = smul.u32 16, %s24
        %p417 = scmp.lt.s32.totalorder %s416, 31
        %s418 = scalar_select %p417, %s416, 31
        %s419 = smul.addr %s418, 2
        %s420 = smul.addr %s419, 8
        %s421 = scalar_lea.vmem %s9, %s420
        %s422 = smul.u32 16, %s24
        %s423 = smul.u32 16, %s24
        %p424 = scmp.lt.s32.totalorder %s423, 31
        %s425 = scalar_select %p424, %s423, 31
        %s426 = smul.addr %s425, 8
        %s427 = scalar_lea.vmem %s10, %s426
        %s428 = smul.u32 16, %s24
        %s429 = smul.u32 16, %s24
        %p430 = scmp.lt.s32.totalorder %s429, 31
        %s431 = scalar_select %p430, %s429, 31
        %s432 = smul.addr %s431, 2
        %s433 = smul.addr %s432, 8
        %s434 = scalar_lea.vmem %s11, %s433
        %s435 = smul.u32 16, %s24
        %v437 = vld [vmem:[%s414] sm:$0xff]
        %v438 = vld [vmem:[%s414 + $0x8] sm:$0xff]
        %v439 = vld [vmem:[%s414 + $0x10] sm:$0xff]
        %v440 = vld [vmem:[%s414 + $0x18] sm:$0xff]
        %v441 = vld [vmem:[%s414 + $0x20] sm:$0xff]
        %v442 = vld [vmem:[%s414 + $0x28] sm:$0xff]
        %v443 = vld [vmem:[%s414 + $0x30] sm:$0xff]
        %v444 = vld [vmem:[%s414 + $0x38] sm:$0xff]
        %v445 = vld [vmem:[%s414 + $0x40] sm:$0xff]
        %v446 = vld [vmem:[%s414 + $0x48] sm:$0xff]
        %v447 = vld [vmem:[%s414 + $0x50] sm:$0xff]
        %v448 = vld [vmem:[%s414 + $0x58] sm:$0xff]
        %v449 = vld [vmem:[%s414 + $0x60] sm:$0xff]
        %v450 = vld [vmem:[%s414 + $0x68] sm:$0xff]
        %v451 = vld [vmem:[%s414 + $0x70] sm:$0xff]
        %v452 = vld [vmem:[%s414 + $0x78] sm:$0xff]
        %v453 = vpack.c.bf16 %v438, %v437
        %v454 = vpack.c.bf16 %v440, %v439
        %v455 = vpack.c.bf16 %v442, %v441
        %v456 = vpack.c.bf16 %v444, %v443
        %v457 = vpack.c.bf16 %v446, %v445
        %v458 = vpack.c.bf16 %v448, %v447
        %v459 = vpack.c.bf16 %v450, %v449
        %v460 = vpack.c.bf16 %v452, %v451
        %v461 = vld [vmem:[%s1] sm:$0xff]
        %v462 = vld [vmem:[%s1 + $0x8] sm:$0xff]
        %v463 = vld [vmem:[%s1 + $0x10] sm:$0xff]
        %v464 = vld [vmem:[%s1 + $0x18] sm:$0xff]
        %v465 = vld [vmem:[%s1 + $0x20] sm:$0xff]
        %v466 = vld [vmem:[%s1 + $0x28] sm:$0xff]
        %v467 = vld [vmem:[%s1 + $0x30] sm:$0xff]
        %v468 = vld [vmem:[%s1 + $0x38] sm:$0xff]
        %v469 = vld [vmem:[%s1 + $0x40] sm:$0xff]
        %v470 = vld [vmem:[%s1 + $0x48] sm:$0xff]
        %v471 = vld [vmem:[%s1 + $0x50] sm:$0xff]
        %v472 = vld [vmem:[%s1 + $0x58] sm:$0xff]
        %v473 = vld [vmem:[%s1 + $0x60] sm:$0xff]
        %v474 = vld [vmem:[%s1 + $0x68] sm:$0xff]
        %v475 = vld [vmem:[%s1 + $0x70] sm:$0xff]
        %v476 = vld [vmem:[%s1 + $0x78] sm:$0xff]
        %v477 = vld [vmem:[%s2] sm:$0x3]
        %v479 = vlaneseq
        %v480 = vshrl.u32 %v479, 7
        %v481 = vsub.s32 0, %v480
        %v482 = vrot.slane %v477, %v481
        %v483 = vlaneseq
        %v484 = vshrl.u32 %v483, 7
        %v485 = vsub.s32 1, %v484
        %v486 = vrot.slane %v477, %v485
        %v505 = vunpack.c.l.b16 %v461
        %v506 = vunpack.c.h.b16 %v461
        %v507 = vunpack.c.l.b16 %v462
        %v508 = vunpack.c.h.b16 %v462
        %v509 = vunpack.c.l.b16 %v463
        %v510 = vunpack.c.h.b16 %v463
        %v511 = vunpack.c.l.b16 %v464
        %v512 = vunpack.c.h.b16 %v464
        %v513 = vunpack.c.l.b16 %v465
        %v514 = vunpack.c.h.b16 %v465
        %v515 = vunpack.c.l.b16 %v466
        %v516 = vunpack.c.h.b16 %v466
        %v517 = vunpack.c.l.b16 %v467
        %v518 = vunpack.c.h.b16 %v467
        %v519 = vunpack.c.l.b16 %v468
        %v520 = vunpack.c.h.b16 %v468
        %v521 = vunpack.c.l.b16 %v469
        %v522 = vunpack.c.h.b16 %v469
        %v523 = vunpack.c.l.b16 %v470
        %v524 = vunpack.c.h.b16 %v470
        %v525 = vunpack.c.l.b16 %v471
        %v526 = vunpack.c.h.b16 %v471
        %v527 = vunpack.c.l.b16 %v472
        %v528 = vunpack.c.h.b16 %v472
        %v529 = vunpack.c.l.b16 %v473
        %v530 = vunpack.c.h.b16 %v473
        %v531 = vunpack.c.l.b16 %v474
        %v532 = vunpack.c.h.b16 %v474
        %v533 = vunpack.c.l.b16 %v475
        %v534 = vunpack.c.h.b16 %v475
        %v535 = vunpack.c.l.b16 %v476
        %v536 = vunpack.c.h.b16 %v476
        %v537 = vpack.c.b16 %v507, %v505
        %v538 = vpack.c.b16 %v508, %v506
        %v539 = vpack.c.b16 %v511, %v509
        %v540 = vpack.c.b16 %v512, %v510
        %v541 = vpack.c.b16 %v515, %v513
        %v542 = vpack.c.b16 %v516, %v514
        %v543 = vpack.c.b16 %v519, %v517
        %v544 = vpack.c.b16 %v520, %v518
        %v545 = vpack.c.b16 %v523, %v521
        %v546 = vpack.c.b16 %v524, %v522
        %v547 = vpack.c.b16 %v527, %v525
        %v548 = vpack.c.b16 %v528, %v526
        %v549 = vpack.c.b16 %v531, %v529
        %v550 = vpack.c.b16 %v532, %v530
        %v551 = vpack.c.b16 %v535, %v533
        %v552 = vpack.c.b16 %v536, %v534
        %569 = vmatprep.subr.bf16.mxu0 %v552
        %570 = vmatpush1.bf16.msra.mxu0 %v551
        %571 = vmatprep.subr.bf16.mxu0 %v550
        %572 = vmatpush1.bf16.msra.mxu0 %v549
        %573 = vmatprep.subr.bf16.mxu0 %v548
        %574 = vmatpush1.bf16.msra.mxu0 %v547
        %575 = vmatprep.subr.bf16.mxu0 %v546
        %576 = vmatpush1.bf16.msra.mxu0 %v545
        %577 = vmatprep.subr.bf16.mxu0 %v544
        %578 = vmatpush1.bf16.msra.mxu0 %v543
        %579 = vmatprep.subr.bf16.mxu0 %v542
        %580 = vmatpush1.bf16.msra.mxu0 %v541
        %581 = vmatprep.subr.bf16.mxu0 %v540
        %582 = vmatpush1.bf16.msra.mxu0 %v539
        %583 = vmatprep.subr.bf16.mxu0 %v538
        %584 = vmatpush1.bf16.msra.mxu0 %v537
        %585 = vmatprep.subr.bf16.mxu0 0
        %586 = vmatpush2.bf16.msra.mxu0 0
        %587 = vmatprep.subr.bf16.mxu0 0
        %588 = vmatpush2.bf16.msra.mxu0 0
        %589 = vmatprep.subr.bf16.mxu0 0
        %590 = vmatpush2.bf16.msra.mxu0 0
        %591 = vmatprep.subr.bf16.mxu0 0
        %592 = vmatpush2.bf16.msra.mxu0 0
        %593 = vmatprep.subr.bf16.mxu0 0
        %594 = vmatpush2.bf16.msra.mxu0 0
        %595 = vmatprep.subr.bf16.mxu0 0
        %596 = vmatpush2.bf16.msra.mxu0 0
        %597 = vmatprep.subr.bf16.mxu0 0
        %598 = vmatpush2.bf16.msra.mxu0 0
        %599 = vmatprep.subr.bf16.mxu0 0
        %600 = vmatpush2.bf16.msra.mxu0 0
        %601 = vmatprep.mubr.bf16.mxu0 0
        %602 = vmatmul.mubr.bf16.gmra.mxu0 %v453
        %v603 = vpop.f32.mrf.mxu0
        %v604 = vadd.f32 %v482, %v603
        %v605 = vpop.f32.mrf.mxu0
        %v606 = vadd.f32 %v486, %v605
        %v607 = vpop.f32.mrf.mxu0
        %v608 = vadd.f32 %v482, %v607
        %v609 = vpop.f32.mrf.mxu0
        %v610 = vadd.f32 %v486, %v609
        %611 = vmatprep.mubr.bf16.mxu0 0
        %612 = vmatmul.mubr.bf16.gmra.mxu0 %v454
        %v613 = vpop.f32.mrf.mxu0
        %v614 = vadd.f32 %v482, %v613
        %v615 = vpop.f32.mrf.mxu0
        %v616 = vadd.f32 %v486, %v615
        %v617 = vpop.f32.mrf.mxu0
        %v618 = vadd.f32 %v482, %v617
        %v619 = vpop.f32.mrf.mxu0
        %v620 = vadd.f32 %v486, %v619
        %621 = vmatprep.mubr.bf16.mxu0 0
        %622 = vmatmul.mubr.bf16.gmra.mxu0 %v455
        %v623 = vpop.f32.mrf.mxu0
        %v624 = vadd.f32 %v482, %v623
        %v625 = vpop.f32.mrf.mxu0
        %v626 = vadd.f32 %v486, %v625
        %v627 = vpop.f32.mrf.mxu0
        %v628 = vadd.f32 %v482, %v627
        %v629 = vpop.f32.mrf.mxu0
        %v630 = vadd.f32 %v486, %v629
        %631 = vmatprep.mubr.bf16.mxu0 0
        %632 = vmatmul.mubr.bf16.gmra.mxu0 %v456
        %v633 = vpop.f32.mrf.mxu0
        %v634 = vadd.f32 %v482, %v633
        %v635 = vpop.f32.mrf.mxu0
        %v636 = vadd.f32 %v486, %v635
        %v637 = vpop.f32.mrf.mxu0
        %v638 = vadd.f32 %v482, %v637
        %v639 = vpop.f32.mrf.mxu0
        %v640 = vadd.f32 %v486, %v639
        %641 = vmatprep.mubr.bf16.mxu0 0
        %642 = vmatmul.mubr.bf16.gmra.mxu0 %v457
        %v643 = vpop.f32.mrf.mxu0
        %v644 = vadd.f32 %v482, %v643
        %v645 = vpop.f32.mrf.mxu0
        %v646 = vadd.f32 %v486, %v645
        %v647 = vpop.f32.mrf.mxu0
        %v648 = vadd.f32 %v482, %v647
        %v649 = vpop.f32.mrf.mxu0
        %v650 = vadd.f32 %v486, %v649
        %651 = vmatprep.mubr.bf16.mxu0 0
        %652 = vmatmul.mubr.bf16.gmra.mxu0 %v458
        %v653 = vpop.f32.mrf.mxu0
        %v654 = vadd.f32 %v482, %v653
        %v655 = vpop.f32.mrf.mxu0
        %v656 = vadd.f32 %v486, %v655
        %v657 = vpop.f32.mrf.mxu0
        %v658 = vadd.f32 %v482, %v657
        %v659 = vpop.f32.mrf.mxu0
        %v660 = vadd.f32 %v486, %v659
        %661 = vmatprep.mubr.bf16.mxu0 0
        %662 = vmatmul.mubr.bf16.gmra.mxu0 %v459
        %v663 = vpop.f32.mrf.mxu0
        %v664 = vadd.f32 %v482, %v663
        %v665 = vpop.f32.mrf.mxu0
        %v666 = vadd.f32 %v486, %v665
        %v667 = vpop.f32.mrf.mxu0
        %v668 = vadd.f32 %v482, %v667
        %v669 = vpop.f32.mrf.mxu0
        %v670 = vadd.f32 %v486, %v669
        %671 = vmatprep.mubr.bf16.mxu0 0
        %672 = vmatmul.mubr.bf16.gmra.mxu0 %v460
        %v673 = vpop.f32.mrf.mxu0
        %v674 = vadd.f32 %v482, %v673
        %v675 = vpop.f32.mrf.mxu0
        %v676 = vadd.f32 %v486, %v675
        %v677 = vpop.f32.mrf.mxu0
        %v678 = vadd.f32 %v482, %v677
        %v679 = vpop.f32.mrf.mxu0
        %v680 = vadd.f32 %v486, %v679
        %681 = vdwg.mxu0
        %v682 = vmax.f32 %v604, 0.0
        %v683 = vmax.f32 %v606, 0.0
        %v684 = vmax.f32 %v608, 0.0
        %v685 = vmax.f32 %v610, 0.0
        %v686 = vmax.f32 %v614, 0.0
        %v687 = vmax.f32 %v616, 0.0
        %v688 = vmax.f32 %v618, 0.0
        %v689 = vmax.f32 %v620, 0.0
        %v690 = vmax.f32 %v624, 0.0
        %v691 = vmax.f32 %v626, 0.0
        %v692 = vmax.f32 %v628, 0.0
        %v693 = vmax.f32 %v630, 0.0
        %v694 = vmax.f32 %v634, 0.0
        %v695 = vmax.f32 %v636, 0.0
        %v696 = vmax.f32 %v638, 0.0
        %v697 = vmax.f32 %v640, 0.0
        %v698 = vmax.f32 %v644, 0.0
        %v699 = vmax.f32 %v646, 0.0
        %v700 = vmax.f32 %v648, 0.0
        %v701 = vmax.f32 %v650, 0.0
        %v702 = vmax.f32 %v654, 0.0
        %v703 = vmax.f32 %v656, 0.0
        %v704 = vmax.f32 %v658, 0.0
        %v705 = vmax.f32 %v660, 0.0
        %v706 = vmax.f32 %v664, 0.0
        %v707 = vmax.f32 %v666, 0.0
        %v708 = vmax.f32 %v668, 0.0
        %v709 = vmax.f32 %v670, 0.0
        %v710 = vmax.f32 %v674, 0.0
        %v711 = vmax.f32 %v676, 0.0
        %v712 = vmax.f32 %v678, 0.0
        %v713 = vmax.f32 %v680, 0.0
        %714 = vst [vmem:[%s421] sm:$0xff] %v682
        %715 = vst [vmem:[%s421 + $0x8] sm:$0xff] %v683
        %716 = vst [vmem:[%s421 + $0x10] sm:$0xff] %v684
        %717 = vst [vmem:[%s421 + $0x18] sm:$0xff] %v685
        %718 = vst [vmem:[%s421 + $0x20] sm:$0xff] %v686
        %719 = vst [vmem:[%s421 + $0x28] sm:$0xff] %v687
        %720 = vst [vmem:[%s421 + $0x30] sm:$0xff] %v688
        %721 = vst [vmem:[%s421 + $0x38] sm:$0xff] %v689
        %722 = vst [vmem:[%s421 + $0x40] sm:$0xff] %v690
        %723 = vst [vmem:[%s421 + $0x48] sm:$0xff] %v691
        %724 = vst [vmem:[%s421 + $0x50] sm:$0xff] %v692
        %725 = vst [vmem:[%s421 + $0x58] sm:$0xff] %v693
        %726 = vst [vmem:[%s421 + $0x60] sm:$0xff] %v694
        %727 = vst [vmem:[%s421 + $0x68] sm:$0xff] %v695
        %728 = vst [vmem:[%s421 + $0x70] sm:$0xff] %v696
        %729 = vst [vmem:[%s421 + $0x78] sm:$0xff] %v697
        %730 = vst [vmem:[%s421 + $0x80] sm:$0xff] %v698
        %731 = vst [vmem:[%s421 + $0x88] sm:$0xff] %v699
        %732 = vst [vmem:[%s421 + $0x90] sm:$0xff] %v700
        %733 = vst [vmem:[%s421 + $0x98] sm:$0xff] %v701
        %734 = vst [vmem:[%s421 + $0xa0] sm:$0xff] %v702
        %735 = vst [vmem:[%s421 + $0xa8] sm:$0xff] %v703
        %736 = vst [vmem:[%s421 + $0xb0] sm:$0xff] %v704
        %737 = vst [vmem:[%s421 + $0xb8] sm:$0xff] %v705
        %738 = vst [vmem:[%s421 + $0xc0] sm:$0xff] %v706
        %739 = vst [vmem:[%s421 + $0xc8] sm:$0xff] %v707
        %740 = vst [vmem:[%s421 + $0xd0] sm:$0xff] %v708
        %741 = vst [vmem:[%s421 + $0xd8] sm:$0xff] %v709
        %742 = vst [vmem:[%s421 + $0xe0] sm:$0xff] %v710
        %743 = vst [vmem:[%s421 + $0xe8] sm:$0xff] %v711
        %744 = vst [vmem:[%s421 + $0xf0] sm:$0xff] %v712
        %745 = vst [vmem:[%s421 + $0xf8] sm:$0xff] %v713
        %v746 = vpack.c.bf16 %v684, %v682
        %v747 = vpack.c.bf16 %v685, %v683
        %v748 = vpack.c.bf16 %v688, %v686
        %v749 = vpack.c.bf16 %v689, %v687
        %v750 = vpack.c.bf16 %v692, %v690
        %v751 = vpack.c.bf16 %v693, %v691
        %v752 = vpack.c.bf16 %v696, %v694
        %v753 = vpack.c.bf16 %v697, %v695
        %v754 = vpack.c.bf16 %v700, %v698
        %v755 = vpack.c.bf16 %v701, %v699
        %v756 = vpack.c.bf16 %v704, %v702
        %v757 = vpack.c.bf16 %v705, %v703
        %v758 = vpack.c.bf16 %v708, %v706
        %v759 = vpack.c.bf16 %v709, %v707
        %v760 = vpack.c.bf16 %v712, %v710
        %v761 = vpack.c.bf16 %v713, %v711
        %v762 = vld [vmem:[%s3] sm:$0xff]
        %v763 = vld [vmem:[%s3 + $0x8] sm:$0xff]
        %v764 = vld [vmem:[%s3 + $0x10] sm:$0xff]
        %v765 = vld [vmem:[%s3 + $0x18] sm:$0xff]
        %v766 = vld [vmem:[%s3 + $0x20] sm:$0xff]
        %v767 = vld [vmem:[%s3 + $0x28] sm:$0xff]
        %v768 = vld [vmem:[%s3 + $0x30] sm:$0xff]
        %v769 = vld [vmem:[%s3 + $0x38] sm:$0xff]
        %v770 = vld [vmem:[%s3 + $0x40] sm:$0xff]
        %v771 = vld [vmem:[%s3 + $0x48] sm:$0xff]
        %v772 = vld [vmem:[%s3 + $0x50] sm:$0xff]
        %v773 = vld [vmem:[%s3 + $0x58] sm:$0xff]
        %v774 = vld [vmem:[%s3 + $0x60] sm:$0xff]
        %v775 = vld [vmem:[%s3 + $0x68] sm:$0xff]
        %v776 = vld [vmem:[%s3 + $0x70] sm:$0xff]
        %v777 = vld [vmem:[%s3 + $0x78] sm:$0xff]
        %v778 = vld [vmem:[%s3 + $0x80] sm:$0xff]
        %v779 = vld [vmem:[%s3 + $0x88] sm:$0xff]
        %v780 = vld [vmem:[%s3 + $0x90] sm:$0xff]
        %v781 = vld [vmem:[%s3 + $0x98] sm:$0xff]
        %v782 = vld [vmem:[%s3 + $0xa0] sm:$0xff]
        %v783 = vld [vmem:[%s3 + $0xa8] sm:$0xff]
        %v784 = vld [vmem:[%s3 + $0xb0] sm:$0xff]
        %v785 = vld [vmem:[%s3 + $0xb8] sm:$0xff]
        %v786 = vld [vmem:[%s3 + $0xc0] sm:$0xff]
        %v787 = vld [vmem:[%s3 + $0xc8] sm:$0xff]
        %v788 = vld [vmem:[%s3 + $0xd0] sm:$0xff]
        %v789 = vld [vmem:[%s3 + $0xd8] sm:$0xff]
        %v790 = vld [vmem:[%s3 + $0xe0] sm:$0xff]
        %v791 = vld [vmem:[%s3 + $0xe8] sm:$0xff]
        %v792 = vld [vmem:[%s3 + $0xf0] sm:$0xff]
        %v793 = vld [vmem:[%s3 + $0xf8] sm:$0xff]
        %v794 = vld [vmem:[%s4] sm:$0x3]
        %v796 = vlaneseq
        %v797 = vshrl.u32 %v796, 7
        %v798 = vsub.s32 0, %v797
        %v799 = vrot.slane %v794, %v798
        %v800 = vlaneseq
        %v801 = vshrl.u32 %v800, 7
        %v802 = vsub.s32 1, %v801
        %v803 = vrot.slane %v794, %v802
        %v838 = vunpack.c.l.b16 %v762
        %v839 = vunpack.c.h.b16 %v762
        %v840 = vunpack.c.l.b16 %v763
        %v841 = vunpack.c.h.b16 %v763
        %v842 = vunpack.c.l.b16 %v764
        %v843 = vunpack.c.h.b16 %v764
        %v844 = vunpack.c.l.b16 %v765
        %v845 = vunpack.c.h.b16 %v765
        %v846 = vunpack.c.l.b16 %v766
        %v847 = vunpack.c.h.b16 %v766
        %v848 = vunpack.c.l.b16 %v767
        %v849 = vunpack.c.h.b16 %v767
        %v850 = vunpack.c.l.b16 %v768
        %v851 = vunpack.c.h.b16 %v768
        %v852 = vunpack.c.l.b16 %v769
        %v853 = vunpack.c.h.b16 %v769
        %v854 = vunpack.c.l.b16 %v770
        %v855 = vunpack.c.h.b16 %v770
        %v856 = vunpack.c.l.b16 %v771
        %v857 = vunpack.c.h.b16 %v771
        %v858 = vunpack.c.l.b16 %v772
        %v859 = vunpack.c.h.b16 %v772
        %v860 = vunpack.c.l.b16 %v773
        %v861 = vunpack.c.h.b16 %v773
        %v862 = vunpack.c.l.b16 %v774
        %v863 = vunpack.c.h.b16 %v774
        %v864 = vunpack.c.l.b16 %v775
        %v865 = vunpack.c.h.b16 %v775
        %v866 = vunpack.c.l.b16 %v776
        %v867 = vunpack.c.h.b16 %v776
        %v868 = vunpack.c.l.b16 %v777
        %v869 = vunpack.c.h.b16 %v777
        %v870 = vunpack.c.l.b16 %v778
        %v871 = vunpack.c.h.b16 %v778
        %v872 = vunpack.c.l.b16 %v779
        %v873 = vunpack.c.h.b16 %v779
        %v874 = vunpack.c.l.b16 %v780
        %v875 = vunpack.c.h.b16 %v780
        %v876 = vunpack.c.l.b16 %v781
        %v877 = vunpack.c.h.b16 %v781
        %v878 = vunpack.c.l.b16 %v782
        %v879 = vunpack.c.h.b16 %v782
        %v880 = vunpack.c.l.b16 %v783
        %v881 = vunpack.c.h.b16 %v783
        %v882 = vunpack.c.l.b16 %v784
        %v883 = vunpack.c.h.b16 %v784
        %v884 = vunpack.c.l.b16 %v785
        %v885 = vunpack.c.h.b16 %v785
        %v886 = vunpack.c.l.b16 %v786
        %v887 = vunpack.c.h.b16 %v786
        %v888 = vunpack.c.l.b16 %v787
        %v889 = vunpack.c.h.b16 %v787
        %v890 = vunpack.c.l.b16 %v788
        %v891 = vunpack.c.h.b16 %v788
        %v892 = vunpack.c.l.b16 %v789
        %v893 = vunpack.c.h.b16 %v789
        %v894 = vunpack.c.l.b16 %v790
        %v895 = vunpack.c.h.b16 %v790
        %v896 = vunpack.c.l.b16 %v791
        %v897 = vunpack.c.h.b16 %v791
        %v898 = vunpack.c.l.b16 %v792
        %v899 = vunpack.c.h.b16 %v792
        %v900 = vunpack.c.l.b16 %v793
        %v901 = vunpack.c.h.b16 %v793
        %v902 = vpack.c.b16 %v840, %v838
        %v903 = vpack.c.b16 %v841, %v839
        %v904 = vpack.c.b16 %v844, %v842
        %v905 = vpack.c.b16 %v845, %v843
        %v906 = vpack.c.b16 %v848, %v846
        %v907 = vpack.c.b16 %v849, %v847
        %v908 = vpack.c.b16 %v852, %v850
        %v909 = vpack.c.b16 %v853, %v851
        %v910 = vpack.c.b16 %v856, %v854
        %v911 = vpack.c.b16 %v857, %v855
        %v912 = vpack.c.b16 %v860, %v858
        %v913 = vpack.c.b16 %v861, %v859
        %v914 = vpack.c.b16 %v864, %v862
        %v915 = vpack.c.b16 %v865, %v863
        %v916 = vpack.c.b16 %v868, %v866
        %v917 = vpack.c.b16 %v869, %v867
        %v918 = vpack.c.b16 %v872, %v870
        %v919 = vpack.c.b16 %v873, %v871
        %v920 = vpack.c.b16 %v876, %v874
        %v921 = vpack.c.b16 %v877, %v875
        %v922 = vpack.c.b16 %v880, %v878
        %v923 = vpack.c.b16 %v881, %v879
        %v924 = vpack.c.b16 %v884, %v882
        %v925 = vpack.c.b16 %v885, %v883
        %v926 = vpack.c.b16 %v888, %v886
        %v927 = vpack.c.b16 %v889, %v887
        %v928 = vpack.c.b16 %v892, %v890
        %v929 = vpack.c.b16 %v893, %v891
        %v930 = vpack.c.b16 %v896, %v894
        %v931 = vpack.c.b16 %v897, %v895
        %v932 = vpack.c.b16 %v900, %v898
        %v933 = vpack.c.b16 %v901, %v899
        %966 = vmatprep.subr.bf16.mxu0 %v917
        %967 = vmatpush1.bf16.msra.mxu0 %v916
        %968 = vmatprep.subr.bf16.mxu0 %v915
        %969 = vmatpush1.bf16.msra.mxu0 %v914
        %970 = vmatprep.subr.bf16.mxu0 %v913
        %971 = vmatpush1.bf16.msra.mxu0 %v912
        %972 = vmatprep.subr.bf16.mxu0 %v911
        %973 = vmatpush1.bf16.msra.mxu0 %v910
        %974 = vmatprep.subr.bf16.mxu0 %v909
        %975 = vmatpush1.bf16.msra.mxu0 %v908
        %976 = vmatprep.subr.bf16.mxu0 %v907
        %977 = vmatpush1.bf16.msra.mxu0 %v906
        %978 = vmatprep.subr.bf16.mxu0 %v905
        %979 = vmatpush1.bf16.msra.mxu0 %v904
        %980 = vmatprep.subr.bf16.mxu0 %v903
        %981 = vmatpush1.bf16.msra.mxu0 %v902
        %982 = vmatprep.subr.bf16.mxu0 %v933
        %983 = vmatpush2.bf16.msra.mxu0 %v932
        %984 = vmatprep.subr.bf16.mxu0 %v931
        %985 = vmatpush2.bf16.msra.mxu0 %v930
        %986 = vmatprep.subr.bf16.mxu0 %v929
        %987 = vmatpush2.bf16.msra.mxu0 %v928
        %988 = vmatprep.subr.bf16.mxu0 %v927
        %989 = vmatpush2.bf16.msra.mxu0 %v926
        %990 = vmatprep.subr.bf16.mxu0 %v925
        %991 = vmatpush2.bf16.msra.mxu0 %v924
        %992 = vmatprep.subr.bf16.mxu0 %v923
        %993 = vmatpush2.bf16.msra.mxu0 %v922
        %994 = vmatprep.subr.bf16.mxu0 %v921
        %995 = vmatpush2.bf16.msra.mxu0 %v920
        %996 = vmatprep.subr.bf16.mxu0 %v919
        %997 = vmatpush2.bf16.msra.mxu0 %v918
        %998 = vmatprep.mubr.bf16.mxu0 %v747
        %999 = vmatmul.mubr.bf16.gmra.mxu0 %v746
        %v1000 = vpop.f32.mrf.mxu0
        %v1001 = vadd.f32 %v799, %v1000
        %v1002 = vpop.f32.mrf.mxu0
        %v1003 = vadd.f32 %v803, %v1002
        %v1004 = vpop.f32.mrf.mxu0
        %v1005 = vadd.f32 %v799, %v1004
        %v1006 = vpop.f32.mrf.mxu0
        %v1007 = vadd.f32 %v803, %v1006
        %1008 = vmatprep.mubr.bf16.mxu0 %v749
        %1009 = vmatmul.mubr.bf16.gmra.mxu0 %v748
        %v1010 = vpop.f32.mrf.mxu0
        %v1011 = vadd.f32 %v799, %v1010
        %v1012 = vpop.f32.mrf.mxu0
        %v1013 = vadd.f32 %v803, %v1012
        %v1014 = vpop.f32.mrf.mxu0
        %v1015 = vadd.f32 %v799, %v1014
        %v1016 = vpop.f32.mrf.mxu0
        %v1017 = vadd.f32 %v803, %v1016
        %1018 = vmatprep.mubr.bf16.mxu0 %v751
        %1019 = vmatmul.mubr.bf16.gmra.mxu0 %v750
        %v1020 = vpop.f32.mrf.mxu0
        %v1021 = vadd.f32 %v799, %v1020
        %v1022 = vpop.f32.mrf.mxu0
        %v1023 = vadd.f32 %v803, %v1022
        %v1024 = vpop.f32.mrf.mxu0
        %v1025 = vadd.f32 %v799, %v1024
        %v1026 = vpop.f32.mrf.mxu0
        %v1027 = vadd.f32 %v803, %v1026
        %1028 = vmatprep.mubr.bf16.mxu0 %v753
        %1029 = vmatmul.mubr.bf16.gmra.mxu0 %v752
        %v1030 = vpop.f32.mrf.mxu0
        %v1031 = vadd.f32 %v799, %v1030
        %v1032 = vpop.f32.mrf.mxu0
        %v1033 = vadd.f32 %v803, %v1032
        %v1034 = vpop.f32.mrf.mxu0
        %v1035 = vadd.f32 %v799, %v1034
        %v1036 = vpop.f32.mrf.mxu0
        %v1037 = vadd.f32 %v803, %v1036
        %1038 = vmatprep.mubr.bf16.mxu0 %v755
        %1039 = vmatmul.mubr.bf16.gmra.mxu0 %v754
        %v1040 = vpop.f32.mrf.mxu0
        %v1041 = vadd.f32 %v799, %v1040
        %v1042 = vpop.f32.mrf.mxu0
        %v1043 = vadd.f32 %v803, %v1042
        %v1044 = vpop.f32.mrf.mxu0
        %v1045 = vadd.f32 %v799, %v1044
        %v1046 = vpop.f32.mrf.mxu0
        %v1047 = vadd.f32 %v803, %v1046
        %1048 = vmatprep.mubr.bf16.mxu0 %v757
        %1049 = vmatmul.mubr.bf16.gmra.mxu0 %v756
        %v1050 = vpop.f32.mrf.mxu0
        %v1051 = vadd.f32 %v799, %v1050
        %v1052 = vpop.f32.mrf.mxu0
        %v1053 = vadd.f32 %v803, %v1052
        %v1054 = vpop.f32.mrf.mxu0
        %v1055 = vadd.f32 %v799, %v1054
        %v1056 = vpop.f32.mrf.mxu0
        %v1057 = vadd.f32 %v803, %v1056
        %1058 = vmatprep.mubr.bf16.mxu0 %v759
        %1059 = vmatmul.mubr.bf16.gmra.mxu0 %v758
        %v1060 = vpop.f32.mrf.mxu0
        %v1061 = vadd.f32 %v799, %v1060
        %v1062 = vpop.f32.mrf.mxu0
        %v1063 = vadd.f32 %v803, %v1062
        %v1064 = vpop.f32.mrf.mxu0
        %v1065 = vadd.f32 %v799, %v1064
        %v1066 = vpop.f32.mrf.mxu0
        %v1067 = vadd.f32 %v803, %v1066
        %1068 = vmatprep.mubr.bf16.mxu0 %v761
        %1069 = vmatmul.mubr.bf16.gmra.mxu0 %v760
        %v1070 = vpop.f32.mrf.mxu0
        %v1071 = vadd.f32 %v799, %v1070
        %v1072 = vpop.f32.mrf.mxu0
        %v1073 = vadd.f32 %v803, %v1072
        %v1074 = vpop.f32.mrf.mxu0
        %v1075 = vadd.f32 %v799, %v1074
        %v1076 = vpop.f32.mrf.mxu0
        %v1077 = vadd.f32 %v803, %v1076
        %1078 = vdwg.mxu0
        %v1079 = vmax.f32 %v1001, 0.0
        %v1080 = vmax.f32 %v1003, 0.0
        %v1081 = vmax.f32 %v1005, 0.0
        %v1082 = vmax.f32 %v1007, 0.0
        %v1083 = vmax.f32 %v1011, 0.0
        %v1084 = vmax.f32 %v1013, 0.0
        %v1085 = vmax.f32 %v1015, 0.0
        %v1086 = vmax.f32 %v1017, 0.0
        %v1087 = vmax.f32 %v1021, 0.0
        %v1088 = vmax.f32 %v1023, 0.0
        %v1089 = vmax.f32 %v1025, 0.0
        %v1090 = vmax.f32 %v1027, 0.0
        %v1091 = vmax.f32 %v1031, 0.0
        %v1092 = vmax.f32 %v1033, 0.0
        %v1093 = vmax.f32 %v1035, 0.0
        %v1094 = vmax.f32 %v1037, 0.0
        %v1095 = vmax.f32 %v1041, 0.0
        %v1096 = vmax.f32 %v1043, 0.0
        %v1097 = vmax.f32 %v1045, 0.0
        %v1098 = vmax.f32 %v1047, 0.0
        %v1099 = vmax.f32 %v1051, 0.0
        %v1100 = vmax.f32 %v1053, 0.0
        %v1101 = vmax.f32 %v1055, 0.0
        %v1102 = vmax.f32 %v1057, 0.0
        %v1103 = vmax.f32 %v1061, 0.0
        %v1104 = vmax.f32 %v1063, 0.0
        %v1105 = vmax.f32 %v1065, 0.0
        %v1106 = vmax.f32 %v1067, 0.0
        %v1107 = vmax.f32 %v1071, 0.0
        %v1108 = vmax.f32 %v1073, 0.0
        %v1109 = vmax.f32 %v1075, 0.0
        %v1110 = vmax.f32 %v1077, 0.0
        %v1111 = vpack.c.bf16 %v1081, %v1079
        %v1112 = vpack.c.bf16 %v1082, %v1080
        %v1113 = vpack.c.bf16 %v1085, %v1083
        %v1114 = vpack.c.bf16 %v1086, %v1084
        %v1115 = vpack.c.bf16 %v1089, %v1087
        %v1116 = vpack.c.bf16 %v1090, %v1088
        %v1117 = vpack.c.bf16 %v1093, %v1091
        %v1118 = vpack.c.bf16 %v1094, %v1092
        %v1119 = vpack.c.bf16 %v1097, %v1095
        %v1120 = vpack.c.bf16 %v1098, %v1096
        %v1121 = vpack.c.bf16 %v1101, %v1099
        %v1122 = vpack.c.bf16 %v1102, %v1100
        %v1123 = vpack.c.bf16 %v1105, %v1103
        %v1124 = vpack.c.bf16 %v1106, %v1104
        %v1125 = vpack.c.bf16 %v1109, %v1107
        %v1126 = vpack.c.bf16 %v1110, %v1108
        %v1127 = vld [vmem:[#allocation2] sm:$0xff]
        %v1128 = vld [vmem:[#allocation2 + $0x8] sm:$0xff]
        %v1129 = vld [vmem:[#allocation2 + $0x10] sm:$0xff]
        %v1130 = vld [vmem:[#allocation2 + $0x18] sm:$0xff]
        %v1131 = vld [vmem:[#allocation2 + $0x20] sm:$0xff]
        %v1132 = vld [vmem:[#allocation2 + $0x28] sm:$0xff]
        %v1133 = vld [vmem:[#allocation2 + $0x30] sm:$0xff]
        %v1134 = vld [vmem:[#allocation2 + $0x38] sm:$0xff]
        %v1135 = vld [vmem:[#allocation2 + $0x40] sm:$0xff]
        %v1136 = vld [vmem:[#allocation2 + $0x48] sm:$0xff]
        %v1137 = vld [vmem:[#allocation2 + $0x50] sm:$0xff]
        %v1138 = vld [vmem:[#allocation2 + $0x58] sm:$0xff]
        %v1139 = vld [vmem:[#allocation2 + $0x60] sm:$0xff]
        %v1140 = vld [vmem:[#allocation2 + $0x68] sm:$0xff]
        %v1141 = vld [vmem:[#allocation2 + $0x70] sm:$0xff]
        %v1142 = vld [vmem:[#allocation2 + $0x78] sm:$0xff]
        %v1143 = vld [vmem:[#allocation2 + $0x80] sm:$0xff]
        %v1144 = vld [vmem:[#allocation2 + $0x88] sm:$0xff]
        %v1145 = vld [vmem:[#allocation2 + $0x90] sm:$0xff]
        %v1146 = vld [vmem:[#allocation2 + $0x98] sm:$0xff]
        %v1147 = vld [vmem:[#allocation2 + $0xa0] sm:$0xff]
        %v1148 = vld [vmem:[#allocation2 + $0xa8] sm:$0xff]
        %v1149 = vld [vmem:[#allocation2 + $0xb0] sm:$0xff]
        %v1150 = vld [vmem:[#allocation2 + $0xb8] sm:$0xff]
        %v1151 = vld [vmem:[#allocation2 + $0xc0] sm:$0xff]
        %v1152 = vld [vmem:[#allocation2 + $0xc8] sm:$0xff]
        %v1153 = vld [vmem:[#allocation2 + $0xd0] sm:$0xff]
        %v1154 = vld [vmem:[#allocation2 + $0xd8] sm:$0xff]
        %v1155 = vld [vmem:[#allocation2 + $0xe0] sm:$0xff]
        %v1156 = vld [vmem:[#allocation2 + $0xe8] sm:$0xff]
        %v1157 = vld [vmem:[#allocation2 + $0xf0] sm:$0xff]
        %v1158 = vld [vmem:[#allocation2 + $0xf8] sm:$0xff]
        %v1159 = vld [vmem:[%s6] sm:$0x3]
        %v1161 = vlaneseq
        %v1162 = vshrl.u32 %v1161, 7
        %v1163 = vsub.s32 0, %v1162
        %v1164 = vrot.slane %v1159, %v1163
        %v1165 = vlaneseq
        %v1166 = vshrl.u32 %v1165, 7
        %v1167 = vsub.s32 1, %v1166
        %v1168 = vrot.slane %v1159, %v1167
        %v1203 = vunpack.c.l.b16 %v1127
        %v1204 = vunpack.c.h.b16 %v1127
        %v1205 = vunpack.c.l.b16 %v1128
        %v1206 = vunpack.c.h.b16 %v1128
        %v1207 = vunpack.c.l.b16 %v1129
        %v1208 = vunpack.c.h.b16 %v1129
        %v1209 = vunpack.c.l.b16 %v1130
        %v1210 = vunpack.c.h.b16 %v1130
        %v1211 = vunpack.c.l.b16 %v1131
        %v1212 = vunpack.c.h.b16 %v1131
        %v1213 = vunpack.c.l.b16 %v1132
        %v1214 = vunpack.c.h.b16 %v1132
        %v1215 = vunpack.c.l.b16 %v1133
        %v1216 = vunpack.c.h.b16 %v1133
        %v1217 = vunpack.c.l.b16 %v1134
        %v1218 = vunpack.c.h.b16 %v1134
        %v1219 = vunpack.c.l.b16 %v1135
        %v1220 = vunpack.c.h.b16 %v1135
        %v1221 = vunpack.c.l.b16 %v1136
        %v1222 = vunpack.c.h.b16 %v1136
        %v1223 = vunpack.c.l.b16 %v1137
        %v1224 = vunpack.c.h.b16 %v1137
        %v1225 = vunpack.c.l.b16 %v1138
        %v1226 = vunpack.c.h.b16 %v1138
        %v1227 = vunpack.c.l.b16 %v1139
        %v1228 = vunpack.c.h.b16 %v1139
        %v1229 = vunpack.c.l.b16 %v1140
        %v1230 = vunpack.c.h.b16 %v1140
        %v1231 = vunpack.c.l.b16 %v1141
        %v1232 = vunpack.c.h.b16 %v1141
        %v1233 = vunpack.c.l.b16 %v1142
        %v1234 = vunpack.c.h.b16 %v1142
        %v1235 = vunpack.c.l.b16 %v1143
        %v1236 = vunpack.c.h.b16 %v1143
        %v1237 = vunpack.c.l.b16 %v1144
        %v1238 = vunpack.c.h.b16 %v1144
        %v1239 = vunpack.c.l.b16 %v1145
        %v1240 = vunpack.c.h.b16 %v1145
        %v1241 = vunpack.c.l.b16 %v1146
        %v1242 = vunpack.c.h.b16 %v1146
        %v1243 = vunpack.c.l.b16 %v1147
        %v1244 = vunpack.c.h.b16 %v1147
        %v1245 = vunpack.c.l.b16 %v1148
        %v1246 = vunpack.c.h.b16 %v1148
        %v1247 = vunpack.c.l.b16 %v1149
        %v1248 = vunpack.c.h.b16 %v1149
        %v1249 = vunpack.c.l.b16 %v1150
        %v1250 = vunpack.c.h.b16 %v1150
        %v1251 = vunpack.c.l.b16 %v1151
        %v1252 = vunpack.c.h.b16 %v1151
        %v1253 = vunpack.c.l.b16 %v1152
        %v1254 = vunpack.c.h.b16 %v1152
        %v1255 = vunpack.c.l.b16 %v1153
        %v1256 = vunpack.c.h.b16 %v1153
        %v1257 = vunpack.c.l.b16 %v1154
        %v1258 = vunpack.c.h.b16 %v1154
        %v1259 = vunpack.c.l.b16 %v1155
        %v1260 = vunpack.c.h.b16 %v1155
        %v1261 = vunpack.c.l.b16 %v1156
        %v1262 = vunpack.c.h.b16 %v1156
        %v1263 = vunpack.c.l.b16 %v1157
        %v1264 = vunpack.c.h.b16 %v1157
        %v1265 = vunpack.c.l.b16 %v1158
        %v1266 = vunpack.c.h.b16 %v1158
        %v1267 = vpack.c.b16 %v1205, %v1203
        %v1268 = vpack.c.b16 %v1206, %v1204
        %v1269 = vpack.c.b16 %v1209, %v1207
        %v1270 = vpack.c.b16 %v1210, %v1208
        %v1271 = vpack.c.b16 %v1213, %v1211
        %v1272 = vpack.c.b16 %v1214, %v1212
        %v1273 = vpack.c.b16 %v1217, %v1215
        %v1274 = vpack.c.b16 %v1218, %v1216
        %v1275 = vpack.c.b16 %v1221, %v1219
        %v1276 = vpack.c.b16 %v1222, %v1220
        %v1277 = vpack.c.b16 %v1225, %v1223
        %v1278 = vpack.c.b16 %v1226, %v1224
        %v1279 = vpack.c.b16 %v1229, %v1227
        %v1280 = vpack.c.b16 %v1230, %v1228
        %v1281 = vpack.c.b16 %v1233, %v1231
        %v1282 = vpack.c.b16 %v1234, %v1232
        %v1283 = vpack.c.b16 %v1237, %v1235
        %v1284 = vpack.c.b16 %v1238, %v1236
        %v1285 = vpack.c.b16 %v1241, %v1239
        %v1286 = vpack.c.b16 %v1242, %v1240
        %v1287 = vpack.c.b16 %v1245, %v1243
        %v1288 = vpack.c.b16 %v1246, %v1244
        %v1289 = vpack.c.b16 %v1249, %v1247
        %v1290 = vpack.c.b16 %v1250, %v1248
        %v1291 = vpack.c.b16 %v1253, %v1251
        %v1292 = vpack.c.b16 %v1254, %v1252
        %v1293 = vpack.c.b16 %v1257, %v1255
        %v1294 = vpack.c.b16 %v1258, %v1256
        %v1295 = vpack.c.b16 %v1261, %v1259
        %v1296 = vpack.c.b16 %v1262, %v1260
        %v1297 = vpack.c.b16 %v1265, %v1263
        %v1298 = vpack.c.b16 %v1266, %v1264
        %1331 = vmatprep.subr.bf16.mxu0 %v1282
        %1332 = vmatpush1.bf16.msra.mxu0 %v1281
        %1333 = vmatprep.subr.bf16.mxu0 %v1280
        %1334 = vmatpush1.bf16.msra.mxu0 %v1279
        %1335 = vmatprep.subr.bf16.mxu0 %v1278
        %1336 = vmatpush1.bf16.msra.mxu0 %v1277
        %1337 = vmatprep.subr.bf16.mxu0 %v1276
        %1338 = vmatpush1.bf16.msra.mxu0 %v1275
        %1339 = vmatprep.subr.bf16.mxu0 %v1274
        %1340 = vmatpush1.bf16.msra.mxu0 %v1273
        %1341 = vmatprep.subr.bf16.mxu0 %v1272
        %1342 = vmatpush1.bf16.msra.mxu0 %v1271
        %1343 = vmatprep.subr.bf16.mxu0 %v1270
        %1344 = vmatpush1.bf16.msra.mxu0 %v1269
        %1345 = vmatprep.subr.bf16.mxu0 %v1268
        %1346 = vmatpush1.bf16.msra.mxu0 %v1267
        %1347 = vmatprep.subr.bf16.mxu0 %v1298
        %1348 = vmatpush2.bf16.msra.mxu0 %v1297
        %1349 = vmatprep.subr.bf16.mxu0 %v1296
        %1350 = vmatpush2.bf16.msra.mxu0 %v1295
        %1351 = vmatprep.subr.bf16.mxu0 %v1294
        %1352 = vmatpush2.bf16.msra.mxu0 %v1293
        %1353 = vmatprep.subr.bf16.mxu0 %v1292
        %1354 = vmatpush2.bf16.msra.mxu0 %v1291
        %1355 = vmatprep.subr.bf16.mxu0 %v1290
        %1356 = vmatpush2.bf16.msra.mxu0 %v1289
        %1357 = vmatprep.subr.bf16.mxu0 %v1288
        %1358 = vmatpush2.bf16.msra.mxu0 %v1287
        %1359 = vmatprep.subr.bf16.mxu0 %v1286
        %1360 = vmatpush2.bf16.msra.mxu0 %v1285
        %1361 = vmatprep.subr.bf16.mxu0 %v1284
        %1362 = vmatpush2.bf16.msra.mxu0 %v1283
        %1363 = vmatprep.mubr.bf16.mxu0 %v1112
        %1364 = vmatmul.mubr.bf16.gmra.mxu0 %v1111
        %v1365 = vpop.f32.mrf.mxu0
        %v1366 = vadd.f32 %v1164, %v1365
        %v1367 = vpop.f32.mrf.mxu0
        %v1368 = vadd.f32 %v1168, %v1367
        %v1369 = vpop.f32.mrf.mxu0
        %v1370 = vadd.f32 %v1164, %v1369
        %v1371 = vpop.f32.mrf.mxu0
        %v1372 = vadd.f32 %v1168, %v1371
        %1373 = vmatprep.mubr.bf16.mxu0 %v1114
        %1374 = vmatmul.mubr.bf16.gmra.mxu0 %v1113
        %v1375 = vpop.f32.mrf.mxu0
        %v1376 = vadd.f32 %v1164, %v1375
        %v1377 = vpop.f32.mrf.mxu0
        %v1378 = vadd.f32 %v1168, %v1377
        %v1379 = vpop.f32.mrf.mxu0
        %v1380 = vadd.f32 %v1164, %v1379
        %v1381 = vpop.f32.mrf.mxu0
        %v1382 = vadd.f32 %v1168, %v1381
        %1383 = vmatprep.mubr.bf16.mxu0 %v1116
        %1384 = vmatmul.mubr.bf16.gmra.mxu0 %v1115
        %v1385 = vpop.f32.mrf.mxu0
        %v1386 = vadd.f32 %v1164, %v1385
        %v1387 = vpop.f32.mrf.mxu0
        %v1388 = vadd.f32 %v1168, %v1387
        %v1389 = vpop.f32.mrf.mxu0
        %v1390 = vadd.f32 %v1164, %v1389
        %v1391 = vpop.f32.mrf.mxu0
        %v1392 = vadd.f32 %v1168, %v1391
        %1393 = vmatprep.mubr.bf16.mxu0 %v1118
        %1394 = vmatmul.mubr.bf16.gmra.mxu0 %v1117
        %v1395 = vpop.f32.mrf.mxu0
        %v1396 = vadd.f32 %v1164, %v1395
        %v1397 = vpop.f32.mrf.mxu0
        %v1398 = vadd.f32 %v1168, %v1397
        %v1399 = vpop.f32.mrf.mxu0
        %v1400 = vadd.f32 %v1164, %v1399
        %v1401 = vpop.f32.mrf.mxu0
        %v1402 = vadd.f32 %v1168, %v1401
        %1403 = vmatprep.mubr.bf16.mxu0 %v1120
        %1404 = vmatmul.mubr.bf16.gmra.mxu0 %v1119
        %v1405 = vpop.f32.mrf.mxu0
        %v1406 = vadd.f32 %v1164, %v1405
        %v1407 = vpop.f32.mrf.mxu0
        %v1408 = vadd.f32 %v1168, %v1407
        %v1409 = vpop.f32.mrf.mxu0
        %v1410 = vadd.f32 %v1164, %v1409
        %v1411 = vpop.f32.mrf.mxu0
        %v1412 = vadd.f32 %v1168, %v1411
        %1413 = vmatprep.mubr.bf16.mxu0 %v1122
        %1414 = vmatmul.mubr.bf16.gmra.mxu0 %v1121
        %v1415 = vpop.f32.mrf.mxu0
        %v1416 = vadd.f32 %v1164, %v1415
        %v1417 = vpop.f32.mrf.mxu0
        %v1418 = vadd.f32 %v1168, %v1417
        %v1419 = vpop.f32.mrf.mxu0
        %v1420 = vadd.f32 %v1164, %v1419
        %v1421 = vpop.f32.mrf.mxu0
        %v1422 = vadd.f32 %v1168, %v1421
        %1423 = vmatprep.mubr.bf16.mxu0 %v1124
        %1424 = vmatmul.mubr.bf16.gmra.mxu0 %v1123
        %v1425 = vpop.f32.mrf.mxu0
        %v1426 = vadd.f32 %v1164, %v1425
        %v1427 = vpop.f32.mrf.mxu0
        %v1428 = vadd.f32 %v1168, %v1427
        %v1429 = vpop.f32.mrf.mxu0
        %v1430 = vadd.f32 %v1164, %v1429
        %v1431 = vpop.f32.mrf.mxu0
        %v1432 = vadd.f32 %v1168, %v1431
        %1433 = vmatprep.mubr.bf16.mxu0 %v1126
        %1434 = vmatmul.mubr.bf16.gmra.mxu0 %v1125
        %v1435 = vpop.f32.mrf.mxu0
        %v1436 = vadd.f32 %v1164, %v1435
        %v1437 = vpop.f32.mrf.mxu0
        %v1438 = vadd.f32 %v1168, %v1437
        %v1439 = vpop.f32.mrf.mxu0
        %v1440 = vadd.f32 %v1164, %v1439
        %v1441 = vpop.f32.mrf.mxu0
        %v1442 = vadd.f32 %v1168, %v1441
        %1443 = vdwg.mxu0
        %v1444 = vmax.f32 %v1366, 0.0
        %v1445 = vmax.f32 %v1368, 0.0
        %v1446 = vmax.f32 %v1370, 0.0
        %v1447 = vmax.f32 %v1372, 0.0
        %v1448 = vmax.f32 %v1376, 0.0
        %v1449 = vmax.f32 %v1378, 0.0
        %v1450 = vmax.f32 %v1380, 0.0
        %v1451 = vmax.f32 %v1382, 0.0
        %v1452 = vmax.f32 %v1386, 0.0
        %v1453 = vmax.f32 %v1388, 0.0
        %v1454 = vmax.f32 %v1390, 0.0
        %v1455 = vmax.f32 %v1392, 0.0
        %v1456 = vmax.f32 %v1396, 0.0
        %v1457 = vmax.f32 %v1398, 0.0
        %v1458 = vmax.f32 %v1400, 0.0
        %v1459 = vmax.f32 %v1402, 0.0
        %v1460 = vmax.f32 %v1406, 0.0
        %v1461 = vmax.f32 %v1408, 0.0
        %v1462 = vmax.f32 %v1410, 0.0
        %v1463 = vmax.f32 %v1412, 0.0
        %v1464 = vmax.f32 %v1416, 0.0
        %v1465 = vmax.f32 %v1418, 0.0
        %v1466 = vmax.f32 %v1420, 0.0
        %v1467 = vmax.f32 %v1422, 0.0
        %v1468 = vmax.f32 %v1426, 0.0
        %v1469 = vmax.f32 %v1428, 0.0
        %v1470 = vmax.f32 %v1430, 0.0
        %v1471 = vmax.f32 %v1432, 0.0
        %v1472 = vmax.f32 %v1436, 0.0
        %v1473 = vmax.f32 %v1438, 0.0
        %v1474 = vmax.f32 %v1440, 0.0
        %v1475 = vmax.f32 %v1442, 0.0
        %v1476 = vpack.c.bf16 %v1446, %v1444
        %v1477 = vpack.c.bf16 %v1447, %v1445
        %v1478 = vpack.c.bf16 %v1450, %v1448
        %v1479 = vpack.c.bf16 %v1451, %v1449
        %v1480 = vpack.c.bf16 %v1454, %v1452
        %v1481 = vpack.c.bf16 %v1455, %v1453
        %v1482 = vpack.c.bf16 %v1458, %v1456
        %v1483 = vpack.c.bf16 %v1459, %v1457
        %v1484 = vpack.c.bf16 %v1462, %v1460
        %v1485 = vpack.c.bf16 %v1463, %v1461
        %v1486 = vpack.c.bf16 %v1466, %v1464
        %v1487 = vpack.c.bf16 %v1467, %v1465
        %v1488 = vpack.c.bf16 %v1470, %v1468
        %v1489 = vpack.c.bf16 %v1471, %v1469
        %v1490 = vpack.c.bf16 %v1474, %v1472
        %v1491 = vpack.c.bf16 %v1475, %v1473
        %v1492 = vld [vmem:[%s7] sm:$0xff]
        %v1493 = vld [vmem:[%s7 + $0x8] sm:$0xf]
        %v1494 = vld [vmem:[%s7 + $0xc] sm:$0xff]
        %v1495 = vld [vmem:[%s7 + $0x14] sm:$0xf]
        %v1496 = vld [vmem:[%s7 + $0x18] sm:$0xff]
        %v1497 = vld [vmem:[%s7 + $0x20] sm:$0xf]
        %v1498 = vld [vmem:[%s7 + $0x24] sm:$0xff]
        %v1499 = vld [vmem:[%s7 + $0x2c] sm:$0xf]
        %v1500 = vld [vmem:[%s7 + $0x30] sm:$0xff]
        %v1501 = vld [vmem:[%s7 + $0x38] sm:$0xf]
        %v1502 = vld [vmem:[%s7 + $0x3c] sm:$0xff]
        %v1503 = vld [vmem:[%s7 + $0x44] sm:$0xf]
        %v1504 = vld [vmem:[%s7 + $0x48] sm:$0xff]
        %v1505 = vld [vmem:[%s7 + $0x50] sm:$0xf]
        %v1506 = vld [vmem:[%s7 + $0x54] sm:$0xff]
        %v1507 = vld [vmem:[%s7 + $0x5c] sm:$0xf]
        %v1508 = vld [vmem:[%s7 + $0x60] sm:$0xff]
        %v1509 = vld [vmem:[%s7 + $0x68] sm:$0xf]
        %v1510 = vld [vmem:[%s7 + $0x6c] sm:$0xff]
        %v1511 = vld [vmem:[%s7 + $0x74] sm:$0xf]
        %v1512 = vld [vmem:[%s7 + $0x78] sm:$0xff]
        %v1513 = vld [vmem:[%s7 + $0x80] sm:$0xf]
        %v1514 = vld [vmem:[%s7 + $0x84] sm:$0xff]
        %v1515 = vld [vmem:[%s7 + $0x8c] sm:$0xf]
        %v1516 = vld [vmem:[%s7 + $0x90] sm:$0xff]
        %v1517 = vld [vmem:[%s7 + $0x98] sm:$0xf]
        %v1518 = vld [vmem:[%s7 + $0x9c] sm:$0xff]
        %v1519 = vld [vmem:[%s7 + $0xa4] sm:$0xf]
        %v1520 = vld [vmem:[%s7 + $0xa8] sm:$0xff]
        %v1521 = vld [vmem:[%s7 + $0xb0] sm:$0xf]
        %v1522 = vld [vmem:[%s7 + $0xb4] sm:$0xff]
        %v1523 = vld [vmem:[%s7 + $0xbc] sm:$0xf]
        %v1524 = vld [vmem:[%s7 + $0xc0] sm:$0xff]
        %v1525 = vld [vmem:[%s7 + $0xc8] sm:$0xf]
        %v1526 = vld [vmem:[%s7 + $0xcc] sm:$0xff]
        %v1527 = vld [vmem:[%s7 + $0xd4] sm:$0xf]
        %v1528 = vld [vmem:[%s7 + $0xd8] sm:$0xff]
        %v1529 = vld [vmem:[%s7 + $0xe0] sm:$0xf]
        %v1530 = vld [vmem:[%s7 + $0xe4] sm:$0xff]
        %v1531 = vld [vmem:[%s7 + $0xec] sm:$0xf]
        %v1532 = vld [vmem:[%s7 + $0xf0] sm:$0xff]
        %v1533 = vld [vmem:[%s7 + $0xf8] sm:$0xf]
        %v1534 = vld [vmem:[%s7 + $0xfc] sm:$0xff]
        %v1535 = vld [vmem:[%s7 + $0x104] sm:$0xf]
        %v1536 = vld [vmem:[%s7 + $0x108] sm:$0xff]
        %v1537 = vld [vmem:[%s7 + $0x110] sm:$0xf]
        %v1538 = vld [vmem:[%s7 + $0x114] sm:$0xff]
        %v1539 = vld [vmem:[%s7 + $0x11c] sm:$0xf]
        %v1540 = vld [vmem:[%s7 + $0x120] sm:$0xff]
        %v1541 = vld [vmem:[%s7 + $0x128] sm:$0xf]
        %v1542 = vld [vmem:[%s7 + $0x12c] sm:$0xff]
        %v1543 = vld [vmem:[%s7 + $0x134] sm:$0xf]
        %v1544 = vld [vmem:[%s7 + $0x138] sm:$0xff]
        %v1545 = vld [vmem:[%s7 + $0x140] sm:$0xf]
        %v1546 = vld [vmem:[%s7 + $0x144] sm:$0xff]
        %v1547 = vld [vmem:[%s7 + $0x14c] sm:$0xf]
        %v1548 = vld [vmem:[%s7 + $0x150] sm:$0xff]
        %v1549 = vld [vmem:[%s7 + $0x158] sm:$0xf]
        %v1550 = vld [vmem:[%s7 + $0x15c] sm:$0xff]
        %v1551 = vld [vmem:[%s7 + $0x164] sm:$0xf]
        %v1552 = vld [vmem:[%s7 + $0x168] sm:$0xff]
        %v1553 = vld [vmem:[%s7 + $0x170] sm:$0xf]
        %v1554 = vld [vmem:[%s7 + $0x174] sm:$0xff]
        %v1555 = vld [vmem:[%s7 + $0x17c] sm:$0xf]
        %v1556 = vld [vmem:[%s8] sm:$0x7]
        %v1558 = vlaneseq
        %v1559 = vshrl.u32 %v1558, 7
        %v1560 = vsub.s32 0, %v1559
        %v1561 = vrot.slane %v1556, %v1560
        %v1562 = vlaneseq
        %v1563 = vshrl.u32 %v1562, 7
        %v1564 = vsub.s32 1, %v1563
        %v1565 = vrot.slane %v1556, %v1564
        %v1566 = vlaneseq
        %v1567 = vshrl.u32 %v1566, 7
        %v1568 = vsub.s32 2, %v1567
        %v1569 = vrot.slane %v1556, %v1568
        %v1637 = vunpack.c.l.b16 %v1492
        %v1638 = vunpack.c.h.b16 %v1492
        %v1639 = vunpack.c.l.b16 %v1493
        %v1640 = vunpack.c.l.b16 %v1494
        %v1641 = vunpack.c.h.b16 %v1494
        %v1642 = vunpack.c.l.b16 %v1495
        %v1643 = vunpack.c.l.b16 %v1496
        %v1644 = vunpack.c.h.b16 %v1496
        %v1645 = vunpack.c.l.b16 %v1497
        %v1646 = vunpack.c.l.b16 %v1498
        %v1647 = vunpack.c.h.b16 %v1498
        %v1648 = vunpack.c.l.b16 %v1499
        %v1649 = vunpack.c.l.b16 %v1500
        %v1650 = vunpack.c.h.b16 %v1500
        %v1651 = vunpack.c.l.b16 %v1501
        %v1652 = vunpack.c.l.b16 %v1502
        %v1653 = vunpack.c.h.b16 %v1502
        %v1654 = vunpack.c.l.b16 %v1503
        %v1655 = vunpack.c.l.b16 %v1504
        %v1656 = vunpack.c.h.b16 %v1504
        %v1657 = vunpack.c.l.b16 %v1505
        %v1658 = vunpack.c.l.b16 %v1506
        %v1659 = vunpack.c.h.b16 %v1506
        %v1660 = vunpack.c.l.b16 %v1507
        %v1661 = vunpack.c.l.b16 %v1508
        %v1662 = vunpack.c.h.b16 %v1508
        %v1663 = vunpack.c.l.b16 %v1509
        %v1664 = vunpack.c.l.b16 %v1510
        %v1665 = vunpack.c.h.b16 %v1510
        %v1666 = vunpack.c.l.b16 %v1511
        %v1667 = vunpack.c.l.b16 %v1512
        %v1668 = vunpack.c.h.b16 %v1512
        %v1669 = vunpack.c.l.b16 %v1513
        %v1670 = vunpack.c.l.b16 %v1514
        %v1671 = vunpack.c.h.b16 %v1514
        %v1672 = vunpack.c.l.b16 %v1515
        %v1673 = vunpack.c.l.b16 %v1516
        %v1674 = vunpack.c.h.b16 %v1516
        %v1675 = vunpack.c.l.b16 %v1517
        %v1676 = vunpack.c.l.b16 %v1518
        %v1677 = vunpack.c.h.b16 %v1518
        %v1678 = vunpack.c.l.b16 %v1519
        %v1679 = vunpack.c.l.b16 %v1520
        %v1680 = vunpack.c.h.b16 %v1520
        %v1681 = vunpack.c.l.b16 %v1521
        %v1682 = vunpack.c.l.b16 %v1522
        %v1683 = vunpack.c.h.b16 %v1522
        %v1684 = vunpack.c.l.b16 %v1523
        %v1685 = vunpack.c.l.b16 %v1524
        %v1686 = vunpack.c.h.b16 %v1524
        %v1687 = vunpack.c.l.b16 %v1525
        %v1688 = vunpack.c.l.b16 %v1526
        %v1689 = vunpack.c.h.b16 %v1526
        %v1690 = vunpack.c.l.b16 %v1527
        %v1691 = vunpack.c.l.b16 %v1528
        %v1692 = vunpack.c.h.b16 %v1528
        %v1693 = vunpack.c.l.b16 %v1529
        %v1694 = vunpack.c.l.b16 %v1530
        %v1695 = vunpack.c.h.b16 %v1530
        %v1696 = vunpack.c.l.b16 %v1531
        %v1697 = vunpack.c.l.b16 %v1532
        %v1698 = vunpack.c.h.b16 %v1532
        %v1699 = vunpack.c.l.b16 %v1533
        %v1700 = vunpack.c.l.b16 %v1534
        %v1701 = vunpack.c.h.b16 %v1534
        %v1702 = vunpack.c.l.b16 %v1535
        %v1703 = vunpack.c.l.b16 %v1536
        %v1704 = vunpack.c.h.b16 %v1536
        %v1705 = vunpack.c.l.b16 %v1537
        %v1706 = vunpack.c.l.b16 %v1538
        %v1707 = vunpack.c.h.b16 %v1538
        %v1708 = vunpack.c.l.b16 %v1539
        %v1709 = vunpack.c.l.b16 %v1540
        %v1710 = vunpack.c.h.b16 %v1540
        %v1711 = vunpack.c.l.b16 %v1541
        %v1712 = vunpack.c.l.b16 %v1542
        %v1713 = vunpack.c.h.b16 %v1542
        %v1714 = vunpack.c.l.b16 %v1543
        %v1715 = vunpack.c.l.b16 %v1544
        %v1716 = vunpack.c.h.b16 %v1544
        %v1717 = vunpack.c.l.b16 %v1545
        %v1718 = vunpack.c.l.b16 %v1546
        %v1719 = vunpack.c.h.b16 %v1546
        %v1720 = vunpack.c.l.b16 %v1547
        %v1721 = vunpack.c.l.b16 %v1548
        %v1722 = vunpack.c.h.b16 %v1548
        %v1723 = vunpack.c.l.b16 %v1549
        %v1724 = vunpack.c.l.b16 %v1550
        %v1725 = vunpack.c.h.b16 %v1550
        %v1726 = vunpack.c.l.b16 %v1551
        %v1727 = vunpack.c.l.b16 %v1552
        %v1728 = vunpack.c.h.b16 %v1552
        %v1729 = vunpack.c.l.b16 %v1553
        %v1730 = vunpack.c.l.b16 %v1554
        %v1731 = vunpack.c.h.b16 %v1554
        %v1732 = vunpack.c.l.b16 %v1555
        %v1733 = vpack.c.b16 %v1640, %v1637
        %v1734 = vpack.c.b16 %v1641, %v1638
        %v1735 = vpack.c.b16 %v1642, %v1639
        %v1736 = vpack.c.b16 %v1646, %v1643
        %v1737 = vpack.c.b16 %v1647, %v1644
        %v1738 = vpack.c.b16 %v1648, %v1645
        %v1739 = vpack.c.b16 %v1652, %v1649
        %v1740 = vpack.c.b16 %v1653, %v1650
        %v1741 = vpack.c.b16 %v1654, %v1651
        %v1742 = vpack.c.b16 %v1658, %v1655
        %v1743 = vpack.c.b16 %v1659, %v1656
        %v1744 = vpack.c.b16 %v1660, %v1657
        %v1745 = vpack.c.b16 %v1664, %v1661
        %v1746 = vpack.c.b16 %v1665, %v1662
        %v1747 = vpack.c.b16 %v1666, %v1663
        %v1748 = vpack.c.b16 %v1670, %v1667
        %v1749 = vpack.c.b16 %v1671, %v1668
        %v1750 = vpack.c.b16 %v1672, %v1669
        %v1751 = vpack.c.b16 %v1676, %v1673
        %v1752 = vpack.c.b16 %v1677, %v1674
        %v1753 = vpack.c.b16 %v1678, %v1675
        %v1754 = vpack.c.b16 %v1682, %v1679
        %v1755 = vpack.c.b16 %v1683, %v1680
        %v1756 = vpack.c.b16 %v1684, %v1681
        %v1757 = vpack.c.b16 %v1688, %v1685
        %v1758 = vpack.c.b16 %v1689, %v1686
        %v1759 = vpack.c.b16 %v1690, %v1687
        %v1760 = vpack.c.b16 %v1694, %v1691
        %v1761 = vpack.c.b16 %v1695, %v1692
        %v1762 = vpack.c.b16 %v1696, %v1693
        %v1763 = vpack.c.b16 %v1700, %v1697
        %v1764 = vpack.c.b16 %v1701, %v1698
        %v1765 = vpack.c.b16 %v1702, %v1699
        %v1766 = vpack.c.b16 %v1706, %v1703
        %v1767 = vpack.c.b16 %v1707, %v1704
        %v1768 = vpack.c.b16 %v1708, %v1705
        %v1769 = vpack.c.b16 %v1712, %v1709
        %v1770 = vpack.c.b16 %v1713, %v1710
        %v1771 = vpack.c.b16 %v1714, %v1711
        %v1772 = vpack.c.b16 %v1718, %v1715
        %v1773 = vpack.c.b16 %v1719, %v1716
        %v1774 = vpack.c.b16 %v1720, %v1717
        %v1775 = vpack.c.b16 %v1724, %v1721
        %v1776 = vpack.c.b16 %v1725, %v1722
        %v1777 = vpack.c.b16 %v1726, %v1723
        %v1778 = vpack.c.b16 %v1730, %v1727
        %v1779 = vpack.c.b16 %v1731, %v1728
        %v1780 = vpack.c.b16 %v1732, %v1729
        %1829 = vmatprep.subr.bf16.mxu0 %v1755
        %1830 = vmatpush1.bf16.msra.mxu0 %v1754
        %1831 = vmatprep.subr.bf16.mxu0 %v1752
        %1832 = vmatpush1.bf16.msra.mxu0 %v1751
        %1833 = vmatprep.subr.bf16.mxu0 %v1749
        %1834 = vmatpush1.bf16.msra.mxu0 %v1748
        %1835 = vmatprep.subr.bf16.mxu0 %v1746
        %1836 = vmatpush1.bf16.msra.mxu0 %v1745
        %1837 = vmatprep.subr.bf16.mxu0 %v1743
        %1838 = vmatpush1.bf16.msra.mxu0 %v1742
        %1839 = vmatprep.subr.bf16.mxu0 %v1740
        %1840 = vmatpush1.bf16.msra.mxu0 %v1739
        %1841 = vmatprep.subr.bf16.mxu0 %v1737
        %1842 = vmatpush1.bf16.msra.mxu0 %v1736
        %1843 = vmatprep.subr.bf16.mxu0 %v1734
        %1844 = vmatpush1.bf16.msra.mxu0 %v1733
        %1845 = vmatprep.subr.bf16.mxu0 %v1779
        %1846 = vmatpush2.bf16.msra.mxu0 %v1778
        %1847 = vmatprep.subr.bf16.mxu0 %v1776
        %1848 = vmatpush2.bf16.msra.mxu0 %v1775
        %1849 = vmatprep.subr.bf16.mxu0 %v1773
        %1850 = vmatpush2.bf16.msra.mxu0 %v1772
        %1851 = vmatprep.subr.bf16.mxu0 %v1770
        %1852 = vmatpush2.bf16.msra.mxu0 %v1769
        %1853 = vmatprep.subr.bf16.mxu0 %v1767
        %1854 = vmatpush2.bf16.msra.mxu0 %v1766
        %1855 = vmatprep.subr.bf16.mxu0 %v1764
        %1856 = vmatpush2.bf16.msra.mxu0 %v1763
        %1857 = vmatprep.subr.bf16.mxu0 %v1761
        %1858 = vmatpush2.bf16.msra.mxu0 %v1760
        %1859 = vmatprep.subr.bf16.mxu0 %v1758
        %1860 = vmatpush2.bf16.msra.mxu0 %v1757
        %1861 = vmatprep.mubr.bf16.mxu0 %v1477
        %1862 = vmatmul.mubr.bf16.gmra.mxu0 %v1476
        %v1863 = vpop.f32.mrf.mxu0
        %v1864 = vadd.f32 %v1561, %v1863
        %v1865 = vpop.f32.mrf.mxu0
        %v1866 = vadd.f32 %v1565, %v1865
        %v1867 = vpop.f32.mrf.mxu0
        %v1868 = vadd.f32 %v1561, %v1867
        %v1869 = vpop.f32.mrf.mxu0
        %v1870 = vadd.f32 %v1565, %v1869
        %1871 = vmatprep.mubr.bf16.mxu0 %v1479
        %1872 = vmatmul.mubr.bf16.gmra.mxu0 %v1478
        %v1873 = vpop.f32.mrf.mxu0
        %v1874 = vadd.f32 %v1561, %v1873
        %v1875 = vpop.f32.mrf.mxu0
        %v1876 = vadd.f32 %v1565, %v1875
        %v1877 = vpop.f32.mrf.mxu0
        %v1878 = vadd.f32 %v1561, %v1877
        %v1879 = vpop.f32.mrf.mxu0
        %v1880 = vadd.f32 %v1565, %v1879
        %1881 = vmatprep.mubr.bf16.mxu0 %v1481
        %1882 = vmatmul.mubr.bf16.gmra.mxu0 %v1480
        %v1883 = vpop.f32.mrf.mxu0
        %v1884 = vadd.f32 %v1561, %v1883
        %v1885 = vpop.f32.mrf.mxu0
        %v1886 = vadd.f32 %v1565, %v1885
        %v1887 = vpop.f32.mrf.mxu0
        %v1888 = vadd.f32 %v1561, %v1887
        %v1889 = vpop.f32.mrf.mxu0
        %v1890 = vadd.f32 %v1565, %v1889
        %1891 = vmatprep.mubr.bf16.mxu0 %v1483
        %1892 = vmatmul.mubr.bf16.gmra.mxu0 %v1482
        %v1893 = vpop.f32.mrf.mxu0
        %v1894 = vadd.f32 %v1561, %v1893
        %v1895 = vpop.f32.mrf.mxu0
        %v1896 = vadd.f32 %v1565, %v1895
        %v1897 = vpop.f32.mrf.mxu0
        %v1898 = vadd.f32 %v1561, %v1897
        %v1899 = vpop.f32.mrf.mxu0
        %v1900 = vadd.f32 %v1565, %v1899
        %1901 = vmatprep.mubr.bf16.mxu0 %v1485
        %1902 = vmatmul.mubr.bf16.gmra.mxu0 %v1484
        %v1903 = vpop.f32.mrf.mxu0
        %v1904 = vadd.f32 %v1561, %v1903
        %v1905 = vpop.f32.mrf.mxu0
        %v1906 = vadd.f32 %v1565, %v1905
        %v1907 = vpop.f32.mrf.mxu0
        %v1908 = vadd.f32 %v1561, %v1907
        %v1909 = vpop.f32.mrf.mxu0
        %v1910 = vadd.f32 %v1565, %v1909
        %1911 = vmatprep.mubr.bf16.mxu0 %v1487
        %1912 = vmatmul.mubr.bf16.gmra.mxu0 %v1486
        %v1913 = vpop.f32.mrf.mxu0
        %v1914 = vadd.f32 %v1561, %v1913
        %v1915 = vpop.f32.mrf.mxu0
        %v1916 = vadd.f32 %v1565, %v1915
        %v1917 = vpop.f32.mrf.mxu0
        %v1918 = vadd.f32 %v1561, %v1917
        %v1919 = vpop.f32.mrf.mxu0
        %v1920 = vadd.f32 %v1565, %v1919
        %1921 = vmatprep.mubr.bf16.mxu0 %v1489
        %1922 = vmatmul.mubr.bf16.gmra.mxu0 %v1488
        %v1923 = vpop.f32.mrf.mxu0
        %v1924 = vadd.f32 %v1561, %v1923
        %v1925 = vpop.f32.mrf.mxu0
        %v1926 = vadd.f32 %v1565, %v1925
        %v1927 = vpop.f32.mrf.mxu0
        %v1928 = vadd.f32 %v1561, %v1927
        %v1929 = vpop.f32.mrf.mxu0
        %v1930 = vadd.f32 %v1565, %v1929
        %1931 = vmatprep.mubr.bf16.mxu0 %v1491
        %1932 = vmatmul.mubr.bf16.gmra.mxu0 %v1490
        %v1933 = vpop.f32.mrf.mxu0
        %v1934 = vadd.f32 %v1561, %v1933
        %v1935 = vpop.f32.mrf.mxu0
        %v1936 = vadd.f32 %v1565, %v1935
        %v1937 = vpop.f32.mrf.mxu0
        %v1938 = vadd.f32 %v1561, %v1937
        %v1939 = vpop.f32.mrf.mxu0
        %v1940 = vadd.f32 %v1565, %v1939
        %1941 = vdwg.mxu0
        %1942 = vmatprep.subr.bf16.mxu0 0
        %1943 = vmatpush1.bf16.msra.mxu0 %v1756
        %1944 = vmatprep.subr.bf16.mxu0 0
        %1945 = vmatpush1.bf16.msra.mxu0 %v1753
        %1946 = vmatprep.subr.bf16.mxu0 0
        %1947 = vmatpush1.bf16.msra.mxu0 %v1750
        %1948 = vmatprep.subr.bf16.mxu0 0
        %1949 = vmatpush1.bf16.msra.mxu0 %v1747
        %1950 = vmatprep.subr.bf16.mxu0 0
        %1951 = vmatpush1.bf16.msra.mxu0 %v1744
        %1952 = vmatprep.subr.bf16.mxu0 0
        %1953 = vmatpush1.bf16.msra.mxu0 %v1741
        %1954 = vmatprep.subr.bf16.mxu0 0
        %1955 = vmatpush1.bf16.msra.mxu0 %v1738
        %1956 = vmatprep.subr.bf16.mxu0 0
        %1957 = vmatpush1.bf16.msra.mxu0 %v1735
        %1958 = vmatprep.subr.bf16.mxu0 0
        %1959 = vmatpush2.bf16.msra.mxu0 %v1780
        %1960 = vmatprep.subr.bf16.mxu0 0
        %1961 = vmatpush2.bf16.msra.mxu0 %v1777
        %1962 = vmatprep.subr.bf16.mxu0 0
        %1963 = vmatpush2.bf16.msra.mxu0 %v1774
        %1964 = vmatprep.subr.bf16.mxu0 0
        %1965 = vmatpush2.bf16.msra.mxu0 %v1771
        %1966 = vmatprep.subr.bf16.mxu0 0
        %1967 = vmatpush2.bf16.msra.mxu0 %v1768
        %1968 = vmatprep.subr.bf16.mxu0 0
        %1969 = vmatpush2.bf16.msra.mxu0 %v1765
        %1970 = vmatprep.subr.bf16.mxu0 0
        %1971 = vmatpush2.bf16.msra.mxu0 %v1762
        %1972 = vmatprep.subr.bf16.mxu0 0
        %1973 = vmatpush2.bf16.msra.mxu0 %v1759
        %1974 = vmatprep.mubr.bf16.mxu0 %v1477
        %1975 = vmatmul.mubr.bf16.gmra.mxu0 %v1476
        %v1976 = vpop.f32.mrf.mxu0
        %v1977 = vadd.f32 %v1569, %v1976
        %v1978 = vpop.f32.mrf.mxu0
        %v1979 = vpop.f32.mrf.mxu0
        %v1980 = vadd.f32 %v1569, %v1979
        %v1981 = vpop.f32.mrf.mxu0
        %1982 = vmatprep.mubr.bf16.mxu0 %v1479
        %1983 = vmatmul.mubr.bf16.gmra.mxu0 %v1478
        %v1984 = vpop.f32.mrf.mxu0
        %v1985 = vadd.f32 %v1569, %v1984
        %v1986 = vpop.f32.mrf.mxu0
        %v1987 = vpop.f32.mrf.mxu0
        %v1988 = vadd.f32 %v1569, %v1987
        %v1989 = vpop.f32.mrf.mxu0
        %1990 = vmatprep.mubr.bf16.mxu0 %v1481
        %1991 = vmatmul.mubr.bf16.gmra.mxu0 %v1480
        %v1992 = vpop.f32.mrf.mxu0
        %v1993 = vadd.f32 %v1569, %v1992
        %v1994 = vpop.f32.mrf.mxu0
        %v1995 = vpop.f32.mrf.mxu0
        %v1996 = vadd.f32 %v1569, %v1995
        %v1997 = vpop.f32.mrf.mxu0
        %1998 = vmatprep.mubr.bf16.mxu0 %v1483
        %1999 = vmatmul.mubr.bf16.gmra.mxu0 %v1482
        %v2000 = vpop.f32.mrf.mxu0
        %v2001 = vadd.f32 %v1569, %v2000
        %v2002 = vpop.f32.mrf.mxu0
        %v2003 = vpop.f32.mrf.mxu0
        %v2004 = vadd.f32 %v1569, %v2003
        %v2005 = vpop.f32.mrf.mxu0
        %2006 = vmatprep.mubr.bf16.mxu0 %v1485
        %2007 = vmatmul.mubr.bf16.gmra.mxu0 %v1484
        %v2008 = vpop.f32.mrf.mxu0
        %v2009 = vadd.f32 %v1569, %v2008
        %v2010 = vpop.f32.mrf.mxu0
        %v2011 = vpop.f32.mrf.mxu0
        %v2012 = vadd.f32 %v1569, %v2011
        %v2013 = vpop.f32.mrf.mxu0
        %2014 = vmatprep.mubr.bf16.mxu0 %v1487
        %2015 = vmatmul.mubr.bf16.gmra.mxu0 %v1486
        %v2016 = vpop.f32.mrf.mxu0
        %v2017 = vadd.f32 %v1569, %v2016
        %v2018 = vpop.f32.mrf.mxu0
        %v2019 = vpop.f32.mrf.mxu0
        %v2020 = vadd.f32 %v1569, %v2019
        %v2021 = vpop.f32.mrf.mxu0
        %2022 = vmatprep.mubr.bf16.mxu0 %v1489
        %2023 = vmatmul.mubr.bf16.gmra.mxu0 %v1488
        %v2024 = vpop.f32.mrf.mxu0
        %v2025 = vadd.f32 %v1569, %v2024
        %v2026 = vpop.f32.mrf.mxu0
        %v2027 = vpop.f32.mrf.mxu0
        %v2028 = vadd.f32 %v1569, %v2027
        %v2029 = vpop.f32.mrf.mxu0
        %2030 = vmatprep.mubr.bf16.mxu0 %v1491
        %2031 = vmatmul.mubr.bf16.gmra.mxu0 %v1490
        %v2032 = vpop.f32.mrf.mxu0
        %v2033 = vadd.f32 %v1569, %v2032
        %v2034 = vpop.f32.mrf.mxu0
        %v2035 = vpop.f32.mrf.mxu0
        %v2036 = vadd.f32 %v1569, %v2035
        %v2037 = vpop.f32.mrf.mxu0
        %2038 = vdwg.mxu0
        %v2039 = vadd.f32 %v437, %v1864
        %v2040 = vadd.f32 %v438, %v1868
        %v2041 = vadd.f32 %v439, %v1874
        %v2042 = vadd.f32 %v440, %v1878
        %v2043 = vadd.f32 %v441, %v1884
        %v2044 = vadd.f32 %v442, %v1888
        %v2045 = vadd.f32 %v443, %v1894
        %v2046 = vadd.f32 %v444, %v1898
        %v2047 = vadd.f32 %v445, %v1904
        %v2048 = vadd.f32 %v446, %v1908
        %v2049 = vadd.f32 %v447, %v1914
        %v2050 = vadd.f32 %v448, %v1918
        %v2051 = vadd.f32 %v449, %v1924
        %v2052 = vadd.f32 %v450, %v1928
        %v2053 = vadd.f32 %v451, %v1934
        %v2054 = vadd.f32 %v452, %v1938
        %2055 = vst [vmem:[%s427] sm:$0xff] %v2039
        %2056 = vst [vmem:[%s427 + $0x8] sm:$0xff] %v2040
        %2057 = vst [vmem:[%s427 + $0x10] sm:$0xff] %v2041
        %2058 = vst [vmem:[%s427 + $0x18] sm:$0xff] %v2042
        %2059 = vst [vmem:[%s427 + $0x20] sm:$0xff] %v2043
        %2060 = vst [vmem:[%s427 + $0x28] sm:$0xff] %v2044
        %2061 = vst [vmem:[%s427 + $0x30] sm:$0xff] %v2045
        %2062 = vst [vmem:[%s427 + $0x38] sm:$0xff] %v2046
        %2063 = vst [vmem:[%s427 + $0x40] sm:$0xff] %v2047
        %2064 = vst [vmem:[%s427 + $0x48] sm:$0xff] %v2048
        %2065 = vst [vmem:[%s427 + $0x50] sm:$0xff] %v2049
        %2066 = vst [vmem:[%s427 + $0x58] sm:$0xff] %v2050
        %2067 = vst [vmem:[%s427 + $0x60] sm:$0xff] %v2051
        %2068 = vst [vmem:[%s427 + $0x68] sm:$0xff] %v2052
        %2069 = vst [vmem:[%s427 + $0x70] sm:$0xff] %v2053
        %2070 = vst [vmem:[%s427 + $0x78] sm:$0xff] %v2054
        %v2071 = vadd.f32 %v682, %v1866
        %v2072 = vadd.f32 %v683, %v1977
        %v2073 = vadd.f32 %v684, %v1870
        %v2074 = vadd.f32 %v685, %v1980
        %v2075 = vadd.f32 %v686, %v1876
        %v2076 = vadd.f32 %v687, %v1985
        %v2077 = vadd.f32 %v688, %v1880
        %v2078 = vadd.f32 %v689, %v1988
        %v2079 = vadd.f32 %v690, %v1886
        %v2080 = vadd.f32 %v691, %v1993
        %v2081 = vadd.f32 %v692, %v1890
        %v2082 = vadd.f32 %v693, %v1996
        %v2083 = vadd.f32 %v694, %v1896
        %v2084 = vadd.f32 %v695, %v2001
        %v2085 = vadd.f32 %v696, %v1900
        %v2086 = vadd.f32 %v697, %v2004
        %v2087 = vadd.f32 %v698, %v1906
        %v2088 = vadd.f32 %v699, %v2009
        %v2089 = vadd.f32 %v700, %v1910
        %v2090 = vadd.f32 %v701, %v2012
        %v2091 = vadd.f32 %v702, %v1916
        %v2092 = vadd.f32 %v703, %v2017
        %v2093 = vadd.f32 %v704, %v1920
        %v2094 = vadd.f32 %v705, %v2020
        %v2095 = vadd.f32 %v706, %v1926
        %v2096 = vadd.f32 %v707, %v2025
        %v2097 = vadd.f32 %v708, %v1930
        %v2098 = vadd.f32 %v709, %v2028
        %v2099 = vadd.f32 %v710, %v1936
        %v2100 = vadd.f32 %v711, %v2033
        %v2101 = vadd.f32 %v712, %v1940
        %v2102 = vadd.f32 %v713, %v2036
        %v2103 = vmul.f32 %v2071, %v2071
        %v2104 = vmul.f32 %v2072, %v2072
        %v2105 = vmul.f32 %v2073, %v2073
        %v2106 = vmul.f32 %v2074, %v2074
        %v2107 = vmul.f32 %v2075, %v2075
        %v2108 = vmul.f32 %v2076, %v2076
        %v2109 = vmul.f32 %v2077, %v2077
        %v2110 = vmul.f32 %v2078, %v2078
        %v2111 = vmul.f32 %v2079, %v2079
        %v2112 = vmul.f32 %v2080, %v2080
        %v2113 = vmul.f32 %v2081, %v2081
        %v2114 = vmul.f32 %v2082, %v2082
        %v2115 = vmul.f32 %v2083, %v2083
        %v2116 = vmul.f32 %v2084, %v2084
        %v2117 = vmul.f32 %v2085, %v2085
        %v2118 = vmul.f32 %v2086, %v2086
        %v2119 = vmul.f32 %v2087, %v2087
        %v2120 = vmul.f32 %v2088, %v2088
        %v2121 = vmul.f32 %v2089, %v2089
        %v2122 = vmul.f32 %v2090, %v2090
        %v2123 = vmul.f32 %v2091, %v2091
        %v2124 = vmul.f32 %v2092, %v2092
        %v2125 = vmul.f32 %v2093, %v2093
        %v2126 = vmul.f32 %v2094, %v2094
        %v2127 = vmul.f32 %v2095, %v2095
        %v2128 = vmul.f32 %v2096, %v2096
        %v2129 = vmul.f32 %v2097, %v2097
        %v2130 = vmul.f32 %v2098, %v2098
        %v2131 = vmul.f32 %v2099, %v2099
        %v2132 = vmul.f32 %v2100, %v2100
        %v2133 = vmul.f32 %v2101, %v2101
        %v2134 = vmul.f32 %v2102, %v2102
        %v2135 = vadd.f32 %v2103, %v2104
        %2136 = vadd.xlane.f32.xlu0 %v2135
        %v2137 = vpop.xlane.xlu0 %2136
        %v2138 = vadd.f32 %v2105, %v2106
        %2139 = vadd.xlane.f32.xlu0 %v2138
        %v2140 = vpop.xlane.xlu0 %2139
        %v2141 = vadd.f32 %v2107, %v2108
        %2142 = vadd.xlane.f32.xlu0 %v2141
        %v2143 = vpop.xlane.xlu0 %2142
        %v2144 = vadd.f32 %v2109, %v2110
        %2145 = vadd.xlane.f32.xlu0 %v2144
        %v2146 = vpop.xlane.xlu0 %2145
        %v2147 = vadd.f32 %v2111, %v2112
        %2148 = vadd.xlane.f32.xlu0 %v2147
        %v2149 = vpop.xlane.xlu0 %2148
        %v2150 = vadd.f32 %v2113, %v2114
        %2151 = vadd.xlane.f32.xlu0 %v2150
        %v2152 = vpop.xlane.xlu0 %2151
        %v2153 = vadd.f32 %v2115, %v2116
        %2154 = vadd.xlane.f32.xlu0 %v2153
        %v2155 = vpop.xlane.xlu0 %2154
        %v2156 = vadd.f32 %v2117, %v2118
        %2157 = vadd.xlane.f32.xlu0 %v2156
        %v2158 = vpop.xlane.xlu0 %2157
        %v2159 = vadd.f32 %v2119, %v2120
        %2160 = vadd.xlane.f32.xlu0 %v2159
        %v2161 = vpop.xlane.xlu0 %2160
        %v2162 = vadd.f32 %v2121, %v2122
        %2163 = vadd.xlane.f32.xlu0 %v2162
        %v2164 = vpop.xlane.xlu0 %2163
        %v2165 = vadd.f32 %v2123, %v2124
        %2166 = vadd.xlane.f32.xlu0 %v2165
        %v2167 = vpop.xlane.xlu0 %2166
        %v2168 = vadd.f32 %v2125, %v2126
        %2169 = vadd.xlane.f32.xlu0 %v2168
        %v2170 = vpop.xlane.xlu0 %2169
        %v2171 = vadd.f32 %v2127, %v2128
        %2172 = vadd.xlane.f32.xlu0 %v2171
        %v2173 = vpop.xlane.xlu0 %2172
        %v2174 = vadd.f32 %v2129, %v2130
        %2175 = vadd.xlane.f32.xlu0 %v2174
        %v2176 = vpop.xlane.xlu0 %2175
        %v2177 = vadd.f32 %v2131, %v2132
        %2178 = vadd.xlane.f32.xlu0 %v2177
        %v2179 = vpop.xlane.xlu0 %2178
        %v2180 = vadd.f32 %v2133, %v2134
        %2181 = vadd.xlane.f32.xlu0 %v2180
        %v2182 = vpop.xlane.xlu0 %2181
        %v2183 = vadd.f32 %v2137, 1e-12
        %v2184 = vadd.f32 %v2140, 1e-12
        %v2185 = vadd.f32 %v2143, 1e-12
        %v2186 = vadd.f32 %v2146, 1e-12
        %v2187 = vadd.f32 %v2149, 1e-12
        %v2188 = vadd.f32 %v2152, 1e-12
        %v2189 = vadd.f32 %v2155, 1e-12
        %v2190 = vadd.f32 %v2158, 1e-12
        %v2191 = vadd.f32 %v2161, 1e-12
        %v2192 = vadd.f32 %v2164, 1e-12
        %v2193 = vadd.f32 %v2167, 1e-12
        %v2194 = vadd.f32 %v2170, 1e-12
        %v2195 = vadd.f32 %v2173, 1e-12
        %v2196 = vadd.f32 %v2176, 1e-12
        %v2197 = vadd.f32 %v2179, 1e-12
        %v2198 = vadd.f32 %v2182, 1e-12
        %v2199 = vrsqrt.pop %v2183
        %v2200 = vrsqrt.pop %v2184
        %v2201 = vrsqrt.pop %v2185
        %v2202 = vrsqrt.pop %v2186
        %v2203 = vrsqrt.pop %v2187
        %v2204 = vrsqrt.pop %v2188
        %v2205 = vrsqrt.pop %v2189
        %v2206 = vrsqrt.pop %v2190
        %v2207 = vrsqrt.pop %v2191
        %v2208 = vrsqrt.pop %v2192
        %v2209 = vrsqrt.pop %v2193
        %v2210 = vrsqrt.pop %v2194
        %v2211 = vrsqrt.pop %v2195
        %v2212 = vrsqrt.pop %v2196
        %v2213 = vrsqrt.pop %v2197
        %v2214 = vrsqrt.pop %v2198
        %v2215 = vmul.f32 %v2071, %v2199
        %v2216 = vmul.f32 %v2072, %v2199
        %v2217 = vmul.f32 %v2073, %v2200
        %v2218 = vmul.f32 %v2074, %v2200
        %v2219 = vmul.f32 %v2075, %v2201
        %v2220 = vmul.f32 %v2076, %v2201
        %v2221 = vmul.f32 %v2077, %v2202
        %v2222 = vmul.f32 %v2078, %v2202
        %v2223 = vmul.f32 %v2079, %v2203
        %v2224 = vmul.f32 %v2080, %v2203
        %v2225 = vmul.f32 %v2081, %v2204
        %v2226 = vmul.f32 %v2082, %v2204
        %v2227 = vmul.f32 %v2083, %v2205
        %v2228 = vmul.f32 %v2084, %v2205
        %v2229 = vmul.f32 %v2085, %v2206
        %v2230 = vmul.f32 %v2086, %v2206
        %v2231 = vmul.f32 %v2087, %v2207
        %v2232 = vmul.f32 %v2088, %v2207
        %v2233 = vmul.f32 %v2089, %v2208
        %v2234 = vmul.f32 %v2090, %v2208
        %v2235 = vmul.f32 %v2091, %v2209
        %v2236 = vmul.f32 %v2092, %v2209
        %v2237 = vmul.f32 %v2093, %v2210
        %v2238 = vmul.f32 %v2094, %v2210
        %v2239 = vmul.f32 %v2095, %v2211
        %v2240 = vmul.f32 %v2096, %v2211
        %v2241 = vmul.f32 %v2097, %v2212
        %v2242 = vmul.f32 %v2098, %v2212
        %v2243 = vmul.f32 %v2099, %v2213
        %v2244 = vmul.f32 %v2100, %v2213
        %v2245 = vmul.f32 %v2101, %v2214
        %v2246 = vmul.f32 %v2102, %v2214
        %2247 = vst [vmem:[%s434] sm:$0xff] %v2215
        %2248 = vst [vmem:[%s434 + $0x8] sm:$0xff] %v2216
        %2249 = vst [vmem:[%s434 + $0x10] sm:$0xff] %v2217
        %2250 = vst [vmem:[%s434 + $0x18] sm:$0xff] %v2218
        %2251 = vst [vmem:[%s434 + $0x20] sm:$0xff] %v2219
        %2252 = vst [vmem:[%s434 + $0x28] sm:$0xff] %v2220
        %2253 = vst [vmem:[%s434 + $0x30] sm:$0xff] %v2221
        %2254 = vst [vmem:[%s434 + $0x38] sm:$0xff] %v2222
        %2255 = vst [vmem:[%s434 + $0x40] sm:$0xff] %v2223
        %2256 = vst [vmem:[%s434 + $0x48] sm:$0xff] %v2224
        %2257 = vst [vmem:[%s434 + $0x50] sm:$0xff] %v2225
        %2258 = vst [vmem:[%s434 + $0x58] sm:$0xff] %v2226
        %2259 = vst [vmem:[%s434 + $0x60] sm:$0xff] %v2227
        %2260 = vst [vmem:[%s434 + $0x68] sm:$0xff] %v2228
        %2261 = vst [vmem:[%s434 + $0x70] sm:$0xff] %v2229
        %2262 = vst [vmem:[%s434 + $0x78] sm:$0xff] %v2230
        %2263 = vst [vmem:[%s434 + $0x80] sm:$0xff] %v2231
        %2264 = vst [vmem:[%s434 + $0x88] sm:$0xff] %v2232
        %2265 = vst [vmem:[%s434 + $0x90] sm:$0xff] %v2233
        %2266 = vst [vmem:[%s434 + $0x98] sm:$0xff] %v2234
        %2267 = vst [vmem:[%s434 + $0xa0] sm:$0xff] %v2235
        %2268 = vst [vmem:[%s434 + $0xa8] sm:$0xff] %v2236
        %2269 = vst [vmem:[%s434 + $0xb0] sm:$0xff] %v2237
        %2270 = vst [vmem:[%s434 + $0xb8] sm:$0xff] %v2238
        %2271 = vst [vmem:[%s434 + $0xc0] sm:$0xff] %v2239
        %2272 = vst [vmem:[%s434 + $0xc8] sm:$0xff] %v2240
        %2273 = vst [vmem:[%s434 + $0xd0] sm:$0xff] %v2241
        %2274 = vst [vmem:[%s434 + $0xd8] sm:$0xff] %v2242
        %2275 = vst [vmem:[%s434 + $0xe0] sm:$0xff] %v2243
        %2276 = vst [vmem:[%s434 + $0xe8] sm:$0xff] %v2244
        %2277 = vst [vmem:[%s434 + $0xf0] sm:$0xff] %v2245
        %2278 = vst [vmem:[%s434 + $0xf8] sm:$0xff] %v2246
        %s2279 = smul.u32 16, %s24
        %p2280 = scmp.lt.s32.totalorder %s2279, 31
        %s2281 = scalar_select %p2280, %s2279, 31
        %s2282 = smul.addr %s2281, 2
        %s2283 = smul.addr %s2282, 8
        %s2284 = scalar_lea.vmem %s9, %s2283
        %s2285 = smul.u32 16, %s24
        %p2286 = scmp.lt.s32.totalorder %s2285, 31
        %s2287 = scalar_select %p2286, %s2285, 31
        %s2288 = smul.addr %s2287, 8
        %s2289 = scalar_lea.vmem %s10, %s2288
        %s2290 = smul.u32 16, %s24
        %p2291 = scmp.lt.s32.totalorder %s2290, 31
        %s2292 = scalar_select %p2291, %s2290, 31
        %s2293 = smul.addr %s2292, 2
        %s2294 = smul.addr %s2293, 8
        %s2295 = scalar_lea.vmem %s11, %s2294
        // Predicated region
        $region61: #{votepose_forward.1} parent=55 // pred_check
          %p2296 = pneg %p236
        $region62: #{votepose_forward.1} parent=55 // pred_check_branch
          %2298 = sbr.rel (%p2296) target = $region64
        $region63: #{votepose_forward.1} parent=55 // pred_region
          %s2299 = smul.u32 16, %s24
        $region64: #{votepose_forward.1} parent=55 // pred_fallthru
          _
        // Predicated region
        $region65: #{votepose_forward.1} parent=55 // pred_check
          %p2300 = pneg %p262
        $region66: #{votepose_forward.1} parent=55 // pred_check_branch
          %2302 = sbr.rel (%p2300) target = $region68
        $region67: #{votepose_forward.1} parent=55 // pred_region
          %s2303 = smul.u32 16, %s24
        $region68: #{votepose_forward.1} parent=55 // pred_fallthru
          _
        // Predicated region
        $region69: #{votepose_forward.1} parent=55 // pred_check
          %p2304 = pneg %p288
        $region70: #{votepose_forward.1} parent=55 // pred_check_branch
          %2306 = sbr.rel (%p2304) target = $region72
        $region71: #{votepose_forward.1} parent=55 // pred_region
          %s2307 = smul.u32 16, %s24
        $region72: #{votepose_forward.1} parent=55 // pred_fallthru
          _
      $region56: #{votepose_forward.1} parent=5 // pred_fallthru
        _
      %p2308 = scmp.le.s32.totalorder 2, %s19
      // Predicated region
      $region73: #{votepose_forward.1} parent=5 // pred_check
        %p2309 = pneg %p2308
      $region74: #{votepose_forward.1} parent=5 // pred_check_branch
        %2311 = sbr.rel (%p2309) target = $region76
      $region75: #{votepose_forward.1} parent=5 // pred_region
        %s2312 = ssub.s32 %s19, 2
        // Predicated region
        $region77: #{votepose_forward.1} parent=75 // pred_check
          %p2313 = pneg %p242
        $region78: #{votepose_forward.1} parent=75 // pred_check_branch
          %2315 = sbr.rel (%p2313) target = $region80
        $region79: #{votepose_forward.1} parent=75 // pred_region
          %s2316 = smul.u32 16, %s25
          %p2317 = scmp.lt.s32.totalorder %s2316, 31
          %s2318 = scalar_select %p2317, %s2316, 31
          %s2319 = smul.addr %s2318, 2
          %s2320 = smul.addr %s2319, 8
          %s2321 = scalar_lea.vmem %s9, %s2320
        $region80: #{votepose_forward.1} parent=75 // pred_fallthru
          _
        // Predicated region
        $region81: #{votepose_forward.1} parent=75 // pred_check
          %p2322 = pneg %p268
        $region82: #{votepose_forward.1} parent=75 // pred_check_branch
          %2324 = sbr.rel (%p2322) target = $region84
        $region83: #{votepose_forward.1} parent=75 // pred_region
          %s2325 = smul.u32 16, %s25
          %p2326 = scmp.lt.s32.totalorder %s2325, 31
          %s2327 = scalar_select %p2326, %s2325, 31
          %s2328 = smul.addr %s2327, 8
          %s2329 = scalar_lea.vmem %s10, %s2328
        $region84: #{votepose_forward.1} parent=75 // pred_fallthru
          _
        // Predicated region
        $region85: #{votepose_forward.1} parent=75 // pred_check
          %p2330 = pneg %p294
        $region86: #{votepose_forward.1} parent=75 // pred_check_branch
          %2332 = sbr.rel (%p2330) target = $region88
        $region87: #{votepose_forward.1} parent=75 // pred_region
          %s2333 = smul.u32 16, %s25
          %p2334 = scmp.lt.s32.totalorder %s2333, 31
          %s2335 = scalar_select %p2334, %s2333, 31
          %s2336 = smul.addr %s2335, 2
          %s2337 = smul.addr %s2336, 8
          %s2338 = scalar_lea.vmem %s11, %s2337
        $region88: #{votepose_forward.1} parent=75 // pred_fallthru
          _
      $region76: #{votepose_forward.1} parent=5 // pred_fallthru
        _
    $region6: #{votepose_forward.1} parent=1 // loop_footer
      %s23 = sadd.s32 1, %s19
    $region7: #{votepose_forward.1} parent=1 // loop_footer_branch
      %18 = sbr.rel target = $region3
    $region8: #{votepose_forward.1} parent=1 // loop_exit
      _
    %2339 = vsyncpa [#allocation3], 1
    %s2340 = scalar_lea.sflag [#allocation3], 1
    %2341 = vsyncpa %s2340, 1

</llo_original>
